<compile_context>
chip_gen: v6e
topology: v6e:2x2x1
jax: 0.10.0
libtpu: 0.0.40
codegen_flags: <defaults>
</compile_context>

<pallas_src>
from functools import partial

import jax
import jax.numpy as jnp
from jax.experimental import pallas as pl
from jax.experimental.pallas import tpu as pltpu

EPS = 1e-5                      # nn.BatchNorm2d default eps
_HALO_ROWS = 8                  # preferred halo-block height (8-row aligned)
_VMEM_LIMIT = 48 * 1024 * 1024  # explicit scoped-VMEM budget (fits v7x 64 MiB)


# ---------------------------------------------------------------------------
# kernels
# ---------------------------------------------------------------------------
def _conv_stage_kernel(x_ref, xup_ref, xdn_ref, w_ref, sc_ref, sh_ref,
                       out_ref, stats_ref, *,
                       W, Th, d, halo_h, apply_input_act):
    """One fused tile: [optional per-channel affine + ReLU on the input]
    -> 3x3 'same' conv (dilation d) -> raw output + per-channel (sum, sumsq).

    x_ref     (1, Cin, Th*W)       current row-block (rows flattened on lanes)
    xup_ref   (1, Cin, halo_h*W)   rows just above the block (last d rows used)
    xdn_ref   (1, Cin, halo_h*W)   rows just below the block (first d rows used)
    w_ref     (Cout, 9*Cin)        weights, tap-major / cin-minor
    sc_ref    (Cin, 1)             input affine scale (used iff apply_input_act)
    sh_ref    (Cin, 1)             input affine shift
    out_ref   (1, Cout, Th*W)      raw conv output (pre-BN)
    stats_ref (1, 1, Cout, 2)      per-tile [sum, sumsq] of the raw conv output
    """
    hb = pl.program_id(1)
    nhb = pl.num_programs(1)
    Cin = x_ref.shape[1]

    x_main = x_ref[0].astype(jnp.float32)                           # (Cin, Th*W)
    up = xup_ref[0].astype(jnp.float32)[:, (halo_h - d) * W: halo_h * W]
    dn = xdn_ref[0].astype(jnp.float32)[:, 0: d * W]

    if apply_input_act:   # fold previous stage's BN + ReLU into this load
        sc = sc_ref[...].astype(jnp.float32)
        sh = sh_ref[...].astype(jnp.float32)
        x_main = jnp.maximum(x_main * sc + sh, 0.0)
        up = jnp.maximum(up * sc + sh, 0.0)
        dn = jnp.maximum(dn * sc + sh, 0.0)

    # Halo rows that fall outside the image contribute zero ('same' padding).
    up = jnp.where(hb > 0, up, 0.0)
    dn = jnp.where(hb + 1 < nhb, dn, 0.0)

    # Flat, zero-padded tile: [d zeros | d rows above | Th rows | d rows below | d zeros]
    zpad = jnp.zeros((Cin, d), jnp.float32)
    xt = jnp.concatenate([zpad, up, x_main, dn, zpad], axis=1)

    # Column index of every output pixel (to mask the left/right W borders).
    col = jax.lax.broadcasted_iota(jnp.int32, (1, Th * W), 1) % W

    # im2col: 9 static lane-offset slices of the padded tile, stacked to K=9*Cin.
    patches = []
    for kh in range(3):
        for kw in range(3):
            off = d + kh * d * W + (kw - 1) * d        # static lane offset
            p = xt[:, off: off + Th * W]               # (Cin, Th*W)
            if kw == 0:
                p = jnp.where(col >= d, p, 0.0)
            elif kw == 2:
                p = jnp.where(col < W - d, p, 0.0)
            patches.append(p)
    pm = jnp.concatenate(patches, axis=0)              # (9*Cin, Th*W)

    # Single MXU contraction; lane-dense (Cout, Th*W) result.
    acc = jnp.dot(w_ref[...].astype(jnp.float32), pm,
                  preferred_element_type=jnp.float32)

    out_ref[...] = acc.reshape(out_ref.shape).astype(out_ref.dtype)

    # One-pass partial BN statistics of the raw conv output (per channel).
    s = jnp.sum(acc, axis=1, keepdims=True)            # (Cout, 1)
    ss = jnp.sum(acc * acc, axis=1, keepdims=True)     # (Cout, 1)
    stats_ref[...] = jnp.concatenate([s, ss], axis=1).reshape(stats_ref.shape)


def _bn_act_kernel(x_ref, sc_ref, sh_ref, o_ref):
    """Per-channel affine (folded BN) + ReLU on one lane-dense tile."""
    x = x_ref[0].astype(jnp.float32)
    y = x * sc_ref[...].astype(jnp.float32) + sh_ref[...].astype(jnp.float32)
    o_ref[...] = jnp.maximum(y, 0.0).reshape(o_ref.shape).astype(o_ref.dtype)


# ---------------------------------------------------------------------------
# pallas_call wrappers
# ---------------------------------------------------------------------------
def _conv_stage(x_flat, w_flat, sc, sh, *, H, W, d, Th, halo_h, apply_input_act):
    N, Cin, _ = x_flat.shape
    Cout = w_flat.shape[0]
    GH = H // Th                     # row blocks per image
    R = Th // halo_h                 # halo blocks per row block
    GHH = H // halo_h                # halo blocks per image

    kern = partial(_conv_stage_kernel, W=W, Th=Th, d=d, halo_h=halo_h,
                   apply_input_act=apply_input_act)

    main_spec = pl.BlockSpec((1, Cin, Th * W), lambda n, h: (n, 0, h))
    up_spec = pl.BlockSpec((1, Cin, halo_h * W),
                           lambda n, h: (n, 0, jnp.maximum(h * R - 1, 0)))
    dn_spec = pl.BlockSpec((1, Cin, halo_h * W),
                           lambda n, h: (n, 0, jnp.minimum((h + 1) * R, GHH - 1)))
    w_spec = pl.BlockSpec((Cout, 9 * Cin), lambda n, h: (0, 0))
    aff_spec = pl.BlockSpec((Cin, 1), lambda n, h: (0, 0))

    return pl.pallas_call(
        kern,
        grid=(N, GH),
        in_specs=[main_spec, up_spec, dn_spec, w_spec, aff_spec, aff_spec],
        out_specs=(pl.BlockSpec((1, Cout, Th * W), lambda n, h: (n, 0, h)),
                   pl.BlockSpec((1, 1, Cout, 2), lambda n, h: (n, h, 0, 0))),
        out_shape=(jax.ShapeDtypeStruct((N, Cout, H * W), jnp.float32),
                   jax.ShapeDtypeStruct((N, GH, Cout, 2), jnp.float32)),
        compiler_params=pltpu.CompilerParams(
            dimension_semantics=("parallel", "parallel"),
            vmem_limit_bytes=_VMEM_LIMIT),
    )(x_flat, x_flat, x_flat, w_flat, sc, sh)


def _bn_act(x_flat, sc, sh, *, Th, W):
    N, C, HW = x_flat.shape
    GH = HW // (Th * W)
    spec = pl.BlockSpec((1, C, Th * W), lambda n, h: (n, 0, h))
    aff = pl.BlockSpec((C, 1), lambda n, h: (0, 0))
    return pl.pallas_call(
        _bn_act_kernel,
        grid=(N, GH),
        in_specs=[spec, aff, aff],
        out_specs=spec,
        out_shape=jax.ShapeDtypeStruct((N, C, HW), x_flat.dtype),
        compiler_params=pltpu.CompilerParams(
            dimension_semantics=("parallel", "parallel"),
            vmem_limit_bytes=_VMEM_LIMIT),
    )(x_flat, sc, sh)


def _bn_affine(stats, count, gamma, beta):
    """Partial per-tile (sum, sumsq) -> global per-channel (scale, shift)."""
    s = jnp.sum(stats[..., 0], axis=(0, 1))            # (C,)
    ss = jnp.sum(stats[..., 1], axis=(0, 1))
    mean = s / count
    var = ss / count - mean * mean                     # biased (training) var
    scale = gamma * jax.lax.rsqrt(var + EPS)
    shift = beta - mean * scale
    return (scale.reshape(-1, 1).astype(jnp.float32),
            shift.reshape(-1, 1).astype(jnp.float32))


def _choose_tiling(H, W, c_max, tile_h=None, tile_budget_bytes=2 << 20):
    """Pick (Th, halo_h) for the flattened (N, C, H*W) layout.

    Main blocks are (1, C, Th*W) with Th*W a multiple of 128 (lane-dense) or
    the full H*W; halo blocks are (1, C, halo_h*W) with the same constraint.
    Bigger Th -> fewer grid steps, until the per-tile VMEM budget is hit.
    """
    def main_ok(th):
        return H % th == 0 and ((th * W) % 128 == 0 or th == H)

    if tile_h is None:
        cands = [th for th in range(8, H + 1, 8) if main_ok(th)]
        if not cands:
            cands = [H]
        fitting = [th for th in cands if th * W * c_max * 4 <= tile_budget_bytes]
        tile_h = max(fitting) if fitting else min(cands)
    elif not main_ok(tile_h):
        raise ValueError(f"tile_h={tile_h} incompatible with H={H}, W={W}")

    if (tile_h % _HALO_ROWS == 0 and H % _HALO_ROWS == 0
            and (_HALO_ROWS * W) % 128 == 0):
        halo_h = _HALO_ROWS           # cheap 8-row aligned halo blocks
    else:
        # TODO(synk): ragged H/W path; falls back to full-tile halo blocks.
        halo_h = tile_h
    return tile_h, halo_h


@partial(jax.jit, static_argnames=("tile_h",))
def midscope_conv2d_block(x_nchw, params, tile_h=None):
    """MidscopeConv2DBlock forward: (N, Cin, H, W) -> (N, filters, H, W)."""
    N, Cin, H, W = x_nchw.shape
    Cout = params["w1"].shape[-1]
    Th, halo_h = _choose_tiling(H, W, max(Cin, Cout), tile_h)

    x_flat = x_nchw.reshape(N, Cin, H * W)             # free reshape, no transpose
    w1 = params["w1"].reshape(9 * Cin, Cout).T         # (Cout, 9*Cin) tap-major
    w2 = params["w2"].reshape(9 * Cout, Cout).T        # (Cout, 9*Cout)
    count = N * H * W
    no_aff = jnp.zeros((Cin, 1), jnp.float32)          # unused in stage 1

    # Stage 1: conv(d=1) -> raw output + partial BN stats.
    # (conv bias intentionally omitted: cancelled by batch-stat BN.)
    y1, st1 = _conv_stage(x_flat, w1, no_aff, no_aff, H=H, W=W, d=1,
                          Th=Th, halo_h=halo_h, apply_input_act=False)
    sc1, sh1 = _bn_affine(st1, count, params["g1"], params["be1"])

    # Stage 2: BN1 + ReLU folded into the input read -> conv(d=2) -> raw + stats.
    y2, st2 = _conv_stage(y1, w2, sc1, sh1, H=H, W=W, d=2,
                          Th=Th, halo_h=halo_h, apply_input_act=True)
    sc2, sh2 = _bn_affine(st2, count, params["g2"], params["be2"])

    # Finalize: BN2 + ReLU, lane-dense elementwise pass.
    out = _bn_act(y2, sc2, sh2, Th=Th, W=W)
    return out.reshape(N, Cout, H, W)                  # free reshape back to NCHW


# ---------------------------------------------------------------------------
# Pure-JAX reference (correctness checking only; keeps the conv bias to show
# it cancels under training-mode BatchNorm)
# ---------------------------------------------------------------------------
def _ref_block(x_nchw, params):
    def step(x, w, b, g, be, dil):
        y = jax.lax.conv_general_dilated(
            x, w, window_strides=(1, 1), padding="SAME",
            rhs_dilation=(dil, dil),
            dimension_numbers=("NCHW", "HWIO", "NCHW"))
        y = y + b.reshape(1, -1, 1, 1)
        mean = jnp.mean(y, axis=(0, 2, 3), keepdims=True)
        var = jnp.mean((y - mean) ** 2, axis=(0, 2, 3), keepdims=True)
        y = (y - mean) / jnp.sqrt(var + EPS)
        y = y * g.reshape(1, -1, 1, 1) + be.reshape(1, -1, 1, 1)
        return jnp.maximum(y, 0.0)

    x = step(x_nchw, params["w1"], params["b1"], params["g1"], params["be1"], 1)
    x = step(x, params["w2"], params["b2"], params["g2"], params["be2"], 2)
    return x


def _he_uniform(key, shape, fan_in):
    limit = jnp.sqrt(6.0 / fan_in)
    return jax.random.uniform(key, shape, jnp.float32, -limit, limit)


def init_params(key, in_chans, filters):
    ks = jax.random.split(key, 8)
    fan1 = in_chans * 3 * 3
    fan2 = filters * 3 * 3
    return {
        # HWIO conv weights (he_uniform); biases only used by the reference.
        "w1": _he_uniform(ks[0], (3, 3, in_chans, filters), fan1),
        "b1": jax.random.uniform(ks[1], (filters,), jnp.float32,
                                 -1.0 / jnp.sqrt(fan1), 1.0 / jnp.sqrt(fan1)),
        "g1": 1.0 + 0.1 * jax.random.normal(ks[2], (filters,), jnp.float32),
        "be1": 0.1 * jax.random.normal(ks[3], (filters,), jnp.float32),
        "w2": _he_uniform(ks[4], (3, 3, filters, filters), fan2),
        "b2": jax.random.uniform(ks[5], (filters,), jnp.float32,
                                 -1.0 / jnp.sqrt(fan2), 1.0 / jnp.sqrt(fan2)),
        "g2": 1.0 + 0.1 * jax.random.normal(ks[6], (filters,), jnp.float32),
        "be2": 0.1 * jax.random.normal(ks[7], (filters,), jnp.float32),
    }


if __name__ == "__main__":
    key = jax.random.PRNGKey(0)
    k_x, k_p = jax.random.split(key)

    N, C_IN, H, W = 2, 4, 16, 16
    FILTERS = 8

    x = jax.random.normal(k_x, (N, C_IN, H, W), jnp.float32)
    params = init_params(k_p, C_IN, FILTERS)

    # tile_h=8 -> 2 row-blocks per image so the halo / edge-masking path and
    # the cross-tile BN-stat accumulation are actually exercised.
    out = jax.block_until_ready(midscope_conv2d_block(x, params, tile_h=8))
    ref = jax.block_until_ready(_ref_block(x, params))

    assert out.shape == (N, FILTERS, H, W)
    max_err = float(jnp.max(jnp.abs(out - ref)))
    assert jnp.allclose(out, ref, rtol=1e-4, atol=1e-4), max_err

    print("KERNEL_OK")
</pallas_src>

<mosaic_0001>
module attributes {stable_mosaic.version = 11 : i64} {
  func.func @_conv_stage_kernel(%arg0: i32, %arg1: i32, %arg2: memref<1x4x128xf32, #tpu.memory_space<vmem>>, %arg3: memref<1x4x128xf32, #tpu.memory_space<vmem>>, %arg4: memref<1x4x128xf32, #tpu.memory_space<vmem>>, %arg5: memref<8x36xf32, #tpu.memory_space<vmem>>, %arg6: memref<4x1xf32, #tpu.memory_space<vmem>>, %arg7: memref<4x1xf32, #tpu.memory_space<vmem>>, %arg8: memref<1x8x128xf32, #tpu.memory_space<vmem>>, %arg9: memref<1x1x8x2xf32, #tpu.memory_space<vmem>>) attributes {dimension_semantics = [#tpu.dimension_semantics<parallel>, #tpu.dimension_semantics<parallel>], iteration_bounds = array<i64: 2, 2>, scalar_prefetch = 0 : i64, scratch_operands = 0 : i64, tpu.core_type = #tpu.core_type<tc>, window_params = [{transform_indices = @transform_0, window_bounds = array<i64: 1, 4, 128>}, {transform_indices = @transform_1, window_bounds = array<i64: 1, 4, 128>}, {transform_indices = @transform_2, window_bounds = array<i64: 1, 4, 128>}, {pipeline_mode = #tpu.pipeline_mode<synchronous>, transform_indices = @transform_3, window_bounds = array<i64: 8, 36>}, {pipeline_mode = #tpu.pipeline_mode<synchronous>, transform_indices = @transform_4, window_bounds = array<i64: 4, 1>}, {pipeline_mode = #tpu.pipeline_mode<synchronous>, transform_indices = @transform_5, window_bounds = array<i64: 4, 1>}, {transform_indices = @transform_6, window_bounds = array<i64: 1, 8, 128>}, {transform_indices = @transform_7, window_bounds = array<i64: 1, 1, 8, 2>}]} {
    %c0 = arith.constant 0 : index
    %c0_0 = arith.constant 0 : index
    %c0_1 = arith.constant 0 : index
    %0 = vector.load %arg2[%c0, %c0_0, %c0_1] : memref<1x4x128xf32, #tpu.memory_space<vmem>>, vector<1x4x128xf32>
    %1 = vector.shape_cast %0 : vector<1x4x128xf32> to vector<4x128xf32>
    %c0_2 = arith.constant 0 : index
    %c0_3 = arith.constant 0 : index
    %c0_4 = arith.constant 0 : index
    %2 = vector.load %arg3[%c0_2, %c0_3, %c0_4] : memref<1x4x128xf32, #tpu.memory_space<vmem>>, vector<1x4x128xf32>
    %3 = vector.shape_cast %2 : vector<1x4x128xf32> to vector<4x128xf32>
    %4 = vector.extract_strided_slice %3 {offsets = [0, 112], sizes = [4, 16], strides = [1, 1]} : vector<4x128xf32> to vector<4x16xf32>
    %c0_5 = arith.constant 0 : index
    %c0_6 = arith.constant 0 : index
    %c0_7 = arith.constant 0 : index
    %5 = vector.load %arg4[%c0_5, %c0_6, %c0_7] : memref<1x4x128xf32, #tpu.memory_space<vmem>>, vector<1x4x128xf32>
    %6 = vector.shape_cast %5 : vector<1x4x128xf32> to vector<4x128xf32>
    %7 = vector.extract_strided_slice %6 {offsets = [0, 0], sizes = [4, 16], strides = [1, 1]} : vector<4x128xf32> to vector<4x16xf32>
    %c0_i32 = arith.constant 0 : i32
    %8 = arith.cmpi sgt, %arg1, %c0_i32 : i32
    %cst = arith.constant 0.000000e+00 : f32
    %9 = vector.broadcast %cst : f32 to vector<4x16xf32>
    %10 = arith.select %8, %4, %9 : vector<4x16xf32>
    %c1_i32 = arith.constant 1 : i32
    %11 = arith.addi %arg1, %c1_i32 : i32
    %c2_i32 = arith.constant 2 : i32
    %12 = arith.cmpi slt, %11, %c2_i32 : i32
    %cst_8 = arith.constant 0.000000e+00 : f32
    %13 = vector.broadcast %cst_8 : f32 to vector<4x16xf32>
    %14 = arith.select %12, %7, %13 : vector<4x16xf32>
    %cst_9 = arith.constant 0.000000e+00 : f32
    %15 = vector.broadcast %cst_9 : f32 to vector<4x1xf32>
    %16 = tpu.concatenate %15, %10, %1, %14, %15 in 1 : vector<4x1xf32>, vector<4x16xf32>, vector<4x128xf32>, vector<4x16xf32>, vector<4x1xf32> -> vector<4x162xf32>
    %17 = tpu.iota {dimensions = array<i32: 1>} : vector<1x128xi32>
    %c16_i32 = arith.constant 16 : i32
    %c0_i32_10 = arith.constant 0 : i32
    %18 = arith.cmpi eq, %c16_i32, %c0_i32_10 : i32
    %c1_i32_11 = arith.constant 1 : i32
    %19 = arith.select %18, %c1_i32_11, %c16_i32 : i32
    %20 = vector.broadcast %19 : i32 to vector<1x128xi32>
    %21 = arith.remsi %17, %20 : vector<1x128xi32>
    %c0_i32_12 = arith.constant 0 : i32
    %22 = vector.broadcast %c0_i32_12 : i32 to vector<1x128xi32>
    %23 = arith.cmpi ne, %21, %22 : vector<1x128xi32>
    %c0_i32_13 = arith.constant 0 : i32
    %24 = vector.broadcast %c0_i32_13 : i32 to vector<1x128xi32>
    %25 = arith.cmpi slt, %21, %24 : vector<1x128xi32>
    %c0_i32_14 = arith.constant 0 : i32
    %26 = arith.cmpi slt, %19, %c0_i32_14 : i32
    %27 = vector.broadcast %26 : i1 to vector<1x128xi1>
    %28 = vector.broadcast %27 : vector<1x128xi1> to vector<1x128xi1>
    %29 = arith.xori %25, %28 : vector<1x128xi1>
    %30 = arith.andi %29, %23 : vector<1x128xi1>
    %31 = vector.broadcast %19 : i32 to vector<1x128xi32>
    %32 = arith.addi %21, %31 : vector<1x128xi32>
    %33 = arith.select %30, %32, %21 : vector<1x128xi1>, vector<1x128xi32>
    %34 = vector.extract_strided_slice %16 {offsets = [0, 0], sizes = [4, 128], strides = [1, 1]} : vector<4x162xf32> to vector<4x128xf32>
    %c1_i32_15 = arith.constant 1 : i32
    %35 = vector.broadcast %c1_i32_15 : i32 to vector<1x128xi32>
    %36 = arith.cmpi sge, %33, %35 : vector<1x128xi32>
    %cst_16 = arith.constant 0.000000e+00 : f32
    %37 = vector.shape_cast %36 : vector<1x128xi1> to vector<1x128xi1>
    %38 = vector.broadcast %37 : vector<1x128xi1> to vector<4x128xi1>
    %39 = vector.broadcast %cst_16 : f32 to vector<4x128xf32>
    %40 = arith.select %38, %34, %39 : vector<4x128xi1>, vector<4x128xf32>
    %41 = vector.extract_strided_slice %16 {offsets = [0, 1], sizes = [4, 128], strides = [1, 1]} : vector<4x162xf32> to vector<4x128xf32>
    %42 = vector.extract_strided_slice %16 {offsets = [0, 2], sizes = [4, 128], strides = [1, 1]} : vector<4x162xf32> to vector<4x128xf32>
    %c15_i32 = arith.constant 15 : i32
    %43 = vector.broadcast %c15_i32 : i32 to vector<1x128xi32>
    %44 = arith.cmpi slt, %33, %43 : vector<1x128xi32>
    %cst_17 = arith.constant 0.000000e+00 : f32
    %45 = vector.shape_cast %44 : vector<1x128xi1> to vector<1x128xi1>
    %46 = vector.broadcast %45 : vector<1x128xi1> to vector<4x128xi1>
    %47 = vector.broadcast %cst_17 : f32 to vector<4x128xf32>
    %48 = arith.select %46, %42, %47 : vector<4x128xi1>, vector<4x128xf32>
    %49 = vector.extract_strided_slice %16 {offsets = [0, 16], sizes = [4, 128], strides = [1, 1]} : vector<4x162xf32> to vector<4x128xf32>
    %c1_i32_18 = arith.constant 1 : i32
    %50 = vector.broadcast %c1_i32_18 : i32 to vector<1x128xi32>
    %51 = arith.cmpi sge, %33, %50 : vector<1x128xi32>
    %cst_19 = arith.constant 0.000000e+00 : f32
    %52 = vector.shape_cast %51 : vector<1x128xi1> to vector<1x128xi1>
    %53 = vector.broadcast %52 : vector<1x128xi1> to vector<4x128xi1>
    %54 = vector.broadcast %cst_19 : f32 to vector<4x128xf32>
    %55 = arith.select %53, %49, %54 : vector<4x128xi1>, vector<4x128xf32>
    %56 = vector.extract_strided_slice %16 {offsets = [0, 17], sizes = [4, 128], strides = [1, 1]} : vector<4x162xf32> to vector<4x128xf32>
    %57 = vector.extract_strided_slice %16 {offsets = [0, 18], sizes = [4, 128], strides = [1, 1]} : vector<4x162xf32> to vector<4x128xf32>
    %c15_i32_20 = arith.constant 15 : i32
    %58 = vector.broadcast %c15_i32_20 : i32 to vector<1x128xi32>
    %59 = arith.cmpi slt, %33, %58 : vector<1x128xi32>
    %cst_21 = arith.constant 0.000000e+00 : f32
    %60 = vector.shape_cast %59 : vector<1x128xi1> to vector<1x128xi1>
    %61 = vector.broadcast %60 : vector<1x128xi1> to vector<4x128xi1>
    %62 = vector.broadcast %cst_21 : f32 to vector<4x128xf32>
    %63 = arith.select %61, %57, %62 : vector<4x128xi1>, vector<4x128xf32>
    %64 = vector.extract_strided_slice %16 {offsets = [0, 32], sizes = [4, 128], strides = [1, 1]} : vector<4x162xf32> to vector<4x128xf32>
    %c1_i32_22 = arith.constant 1 : i32
    %65 = vector.broadcast %c1_i32_22 : i32 to vector<1x128xi32>
    %66 = arith.cmpi sge, %33, %65 : vector<1x128xi32>
    %cst_23 = arith.constant 0.000000e+00 : f32
    %67 = vector.shape_cast %66 : vector<1x128xi1> to vector<1x128xi1>
    %68 = vector.broadcast %67 : vector<1x128xi1> to vector<4x128xi1>
    %69 = vector.broadcast %cst_23 : f32 to vector<4x128xf32>
    %70 = arith.select %68, %64, %69 : vector<4x128xi1>, vector<4x128xf32>
    %71 = vector.extract_strided_slice %16 {offsets = [0, 33], sizes = [4, 128], strides = [1, 1]} : vector<4x162xf32> to vector<4x128xf32>
    %72 = vector.extract_strided_slice %16 {offsets = [0, 34], sizes = [4, 128], strides = [1, 1]} : vector<4x162xf32> to vector<4x128xf32>
    %c15_i32_24 = arith.constant 15 : i32
    %73 = vector.broadcast %c15_i32_24 : i32 to vector<1x128xi32>
    %74 = arith.cmpi slt, %33, %73 : vector<1x128xi32>
    %cst_25 = arith.constant 0.000000e+00 : f32
    %75 = vector.shape_cast %74 : vector<1x128xi1> to vector<1x128xi1>
    %76 = vector.broadcast %75 : vector<1x128xi1> to vector<4x128xi1>
    %77 = vector.broadcast %cst_25 : f32 to vector<4x128xf32>
    %78 = arith.select %76, %72, %77 : vector<4x128xi1>, vector<4x128xf32>
    %79 = tpu.concatenate %40, %41, %48, %55, %56, %63, %70, %71, %78 in 0 : vector<4x128xf32>, vector<4x128xf32>, vector<4x128xf32>, vector<4x128xf32>, vector<4x128xf32>, vector<4x128xf32>, vector<4x128xf32>, vector<4x128xf32>, vector<4x128xf32> -> vector<36x128xf32>
    %c0_26 = arith.constant 0 : index
    %c0_27 = arith.constant 0 : index
    %80 = vector.load %arg5[%c0_26, %c0_27] : memref<8x36xf32, #tpu.memory_space<vmem>>, vector<8x36xf32>
    %cst_28 = arith.constant dense<0.000000e+00> : vector<8x128xf32>
    %81 = tpu.matmul %80, %79, %cst_28 {dimension_numbers = #tpu.dot_dimension_numbers<[1], [0], [0], [1], [0, 0, 1, 1], [], []>} : vector<8x36xf32>, vector<36x128xf32>, vector<8x128xf32> -> vector<8x128xf32>
    %82 = vector.shape_cast %81 : vector<8x128xf32> to vector<1x8x128xf32>
    %c0_29 = arith.constant 0 : index
    %c0_30 = arith.constant 0 : index
    %c0_31 = arith.constant 0 : index
    %83 = vector.load %arg8[%c0_29, %c0_30, %c0_31] : memref<1x8x128xf32, #tpu.memory_space<vmem>>, vector<1x8x128xf32>
    tpu.vector_store %arg8[%c0_29, %c0_30, %c0_31], %82 {strides = array<i32>} : memref<1x8x128xf32, #tpu.memory_space<vmem>>, vector<1x8x128xf32>,
    %cst_32 = arith.constant dense<0.000000e+00> : vector<8xf32>
    %84 = vector.multi_reduction <add>, %81, %cst_32 [1] : vector<8x128xf32> to vector<8xf32>
    %85 = vector.shape_cast %84 : vector<8xf32> to vector<8x1xf32>
    %86 = arith.mulf %81, %81 : vector<8x128xf32>
    %cst_33 = arith.constant dense<0.000000e+00> : vector<8xf32>
    %87 = vector.multi_reduction <add>, %86, %cst_33 [1] : vector<8x128xf32> to vector<8xf32>
    %88 = vector.shape_cast %87 : vector<8xf32> to vector<8x1xf32>
    %89 = tpu.concatenate %85, %88 in 1 : vector<8x1xf32>, vector<8x1xf32> -> vector<8x2xf32>
    %90 = vector.shape_cast %89 : vector<8x2xf32> to vector<1x1x8x2xf32>
    %c0_34 = arith.constant 0 : index
    %c0_35 = arith.constant 0 : index
    %c0_36 = arith.constant 0 : index
    %c0_37 = arith.constant 0 : index
    %91 = vector.load %arg9[%c0_34, %c0_35, %c0_36, %c0_37] : memref<1x1x8x2xf32, #tpu.memory_space<vmem>>, vector<1x1x8x2xf32>
    tpu.vector_store %arg9[%c0_34, %c0_35, %c0_36, %c0_37], %90 {strides = array<i32>} : memref<1x1x8x2xf32, #tpu.memory_space<vmem>>, vector<1x1x8x2xf32>,
    return
  }
  func.func @transform_0(%arg0: i32, %arg1: i32) -> (i32, i32, i32) {
    %c0_i32 = arith.constant 0 : i32
    %c0_i32_0 = arith.constant 0 : i32
    return %arg0, %c0_i32, %arg1 : i32, i32, i32
  }
  func.func @transform_1(%arg0: i32, %arg1: i32) -> (i32, i32, i32) {
    %c1_i32 = arith.constant 1 : i32
    %0 = arith.muli %arg1, %c1_i32 : i32
    %c1_i32_0 = arith.constant 1 : i32
    %1 = arith.subi %0, %c1_i32_0 : i32
    %c0_i32 = arith.constant 0 : i32
    %2 = arith.maxsi %1, %c0_i32 : i32
    %c0_i32_1 = arith.constant 0 : i32
    %c0_i32_2 = arith.constant 0 : i32
    return %arg0, %c0_i32_1, %2 : i32, i32, i32
  }
  func.func @transform_2(%arg0: i32, %arg1: i32) -> (i32, i32, i32) {
    %c1_i32 = arith.constant 1 : i32
    %0 = arith.addi %arg1, %c1_i32 : i32
    %c1_i32_0 = arith.constant 1 : i32
    %1 = arith.muli %0, %c1_i32_0 : i32
    %c1_i32_1 = arith.constant 1 : i32
    %2 = arith.minsi %1, %c1_i32_1 : i32
    %c0_i32 = arith.constant 0 : i32
    %c0_i32_2 = arith.constant 0 : i32
    return %arg0, %c0_i32, %2 : i32, i32, i32
  }
  func.func @transform_3(%arg0: i32, %arg1: i32) -> (i32, i32) {
    %c0_i32 = arith.constant 0 : i32
    %c0_i32_0 = arith.constant 0 : i32
    %c0_i32_1 = arith.constant 0 : i32
    return %c0_i32, %c0_i32_0 : i32, i32
  }
  func.func @transform_4(%arg0: i32, %arg1: i32) -> (i32, i32) {
    %c0_i32 = arith.constant 0 : i32
    %c0_i32_0 = arith.constant 0 : i32
    %c0_i32_1 = arith.constant 0 : i32
    return %c0_i32, %c0_i32_0 : i32, i32
  }
  func.func @transform_5(%arg0: i32, %arg1: i32) -> (i32, i32) {
    %c0_i32 = arith.constant 0 : i32
    %c0_i32_0 = arith.constant 0 : i32
    %c0_i32_1 = arith.constant 0 : i32
    return %c0_i32, %c0_i32_0 : i32, i32
  }
  func.func @transform_6(%arg0: i32, %arg1: i32) -> (i32, i32, i32) {
    %c0_i32 = arith.constant 0 : i32
    %c0_i32_0 = arith.constant 0 : i32
    return %arg0, %c0_i32, %arg1 : i32, i32, i32
  }
  func.func @transform_7(%arg0: i32, %arg1: i32) -> (i32, i32, i32, i32) {
    %c0_i32 = arith.constant 0 : i32
    %c0_i32_0 = arith.constant 0 : i32
    %c0_i32_1 = arith.constant 0 : i32
    return %arg0, %arg1, %c0_i32, %c0_i32_0 : i32, i32, i32, i32
  }
}

module attributes {stable_mosaic.version = 11 : i64} {
  func.func @_conv_stage_kernel(%arg0: i32, %arg1: i32, %arg2: memref<1x8x128xf32, #tpu.memory_space<vmem>>, %arg3: memref<1x8x128xf32, #tpu.memory_space<vmem>>, %arg4: memref<1x8x128xf32, #tpu.memory_space<vmem>>, %arg5: memref<8x72xf32, #tpu.memory_space<vmem>>, %arg6: memref<8x1xf32, #tpu.memory_space<vmem>>, %arg7: memref<8x1xf32, #tpu.memory_space<vmem>>, %arg8: memref<1x8x128xf32, #tpu.memory_space<vmem>>, %arg9: memref<1x1x8x2xf32, #tpu.memory_space<vmem>>) attributes {dimension_semantics = [#tpu.dimension_semantics<parallel>, #tpu.dimension_semantics<parallel>], iteration_bounds = array<i64: 2, 2>, scalar_prefetch = 0 : i64, scratch_operands = 0 : i64, tpu.core_type = #tpu.core_type<tc>, window_params = [{transform_indices = @transform_0, window_bounds = array<i64: 1, 8, 128>}, {transform_indices = @transform_1, window_bounds = array<i64: 1, 8, 128>}, {transform_indices = @transform_2, window_bounds = array<i64: 1, 8, 128>}, {pipeline_mode = #tpu.pipeline_mode<synchronous>, transform_indices = @transform_3, window_bounds = array<i64: 8, 72>}, {pipeline_mode = #tpu.pipeline_mode<synchronous>, transform_indices = @transform_4, window_bounds = array<i64: 8, 1>}, {pipeline_mode = #tpu.pipeline_mode<synchronous>, transform_indices = @transform_5, window_bounds = array<i64: 8, 1>}, {transform_indices = @transform_6, window_bounds = array<i64: 1, 8, 128>}, {transform_indices = @transform_7, window_bounds = array<i64: 1, 1, 8, 2>}]} {
    %c0 = arith.constant 0 : index
    %c0_0 = arith.constant 0 : index
    %c0_1 = arith.constant 0 : index
    %0 = vector.load %arg2[%c0, %c0_0, %c0_1] : memref<1x8x128xf32, #tpu.memory_space<vmem>>, vector<1x8x128xf32>
    %1 = vector.shape_cast %0 : vector<1x8x128xf32> to vector<8x128xf32>
    %c0_2 = arith.constant 0 : index
    %c0_3 = arith.constant 0 : index
    %c0_4 = arith.constant 0 : index
    %2 = vector.load %arg3[%c0_2, %c0_3, %c0_4] : memref<1x8x128xf32, #tpu.memory_space<vmem>>, vector<1x8x128xf32>
    %3 = vector.shape_cast %2 : vector<1x8x128xf32> to vector<8x128xf32>
    %4 = vector.extract_strided_slice %3 {offsets = [0, 96], sizes = [8, 32], strides = [1, 1]} : vector<8x128xf32> to vector<8x32xf32>
    %c0_5 = arith.constant 0 : index
    %c0_6 = arith.constant 0 : index
    %c0_7 = arith.constant 0 : index
    %5 = vector.load %arg4[%c0_5, %c0_6, %c0_7] : memref<1x8x128xf32, #tpu.memory_space<vmem>>, vector<1x8x128xf32>
    %6 = vector.shape_cast %5 : vector<1x8x128xf32> to vector<8x128xf32>
    %7 = vector.extract_strided_slice %6 {offsets = [0, 0], sizes = [8, 32], strides = [1, 1]} : vector<8x128xf32> to vector<8x32xf32>
    %c0_8 = arith.constant 0 : index
    %c0_9 = arith.constant 0 : index
    %8 = vector.load %arg6[%c0_8, %c0_9] : memref<8x1xf32, #tpu.memory_space<vmem>>, vector<8x1xf32>
    %c0_10 = arith.constant 0 : index
    %c0_11 = arith.constant 0 : index
    %9 = vector.load %arg7[%c0_10, %c0_11] : memref<8x1xf32, #tpu.memory_space<vmem>>, vector<8x1xf32>
    %10 = vector.broadcast %8 : vector<8x1xf32> to vector<8x128xf32>
    %11 = arith.mulf %1, %10 : vector<8x128xf32>
    %12 = vector.broadcast %9 : vector<8x1xf32> to vector<8x128xf32>
    %13 = arith.addf %11, %12 : vector<8x128xf32>
    %cst = arith.constant 0.000000e+00 : f32
    %14 = vector.broadcast %cst : f32 to vector<8x128xf32>
    %15 = arith.maximumf %13, %14 : vector<8x128xf32>
    %16 = vector.broadcast %8 : vector<8x1xf32> to vector<8x32xf32>
    %17 = arith.mulf %4, %16 : vector<8x32xf32>
    %18 = vector.broadcast %9 : vector<8x1xf32> to vector<8x32xf32>
    %19 = arith.addf %17, %18 : vector<8x32xf32>
    %cst_12 = arith.constant 0.000000e+00 : f32
    %20 = vector.broadcast %cst_12 : f32 to vector<8x32xf32>
    %21 = arith.maximumf %19, %20 : vector<8x32xf32>
    %22 = vector.broadcast %8 : vector<8x1xf32> to vector<8x32xf32>
    %23 = arith.mulf %7, %22 : vector<8x32xf32>
    %24 = vector.broadcast %9 : vector<8x1xf32> to vector<8x32xf32>
    %25 = arith.addf %23, %24 : vector<8x32xf32>
    %cst_13 = arith.constant 0.000000e+00 : f32
    %26 = vector.broadcast %cst_13 : f32 to vector<8x32xf32>
    %27 = arith.maximumf %25, %26 : vector<8x32xf32>
    %c0_i32 = arith.constant 0 : i32
    %28 = arith.cmpi sgt, %arg1, %c0_i32 : i32
    %cst_14 = arith.constant 0.000000e+00 : f32
    %29 = vector.broadcast %cst_14 : f32 to vector<8x32xf32>
    %30 = arith.select %28, %21, %29 : vector<8x32xf32>
    %c1_i32 = arith.constant 1 : i32
    %31 = arith.addi %arg1, %c1_i32 : i32
    %c2_i32 = arith.constant 2 : i32
    %32 = arith.cmpi slt, %31, %c2_i32 : i32
    %cst_15 = arith.constant 0.000000e+00 : f32
    %33 = vector.broadcast %cst_15 : f32 to vector<8x32xf32>
    %34 = arith.select %32, %27, %33 : vector<8x32xf32>
    %cst_16 = arith.constant 0.000000e+00 : f32
    %35 = vector.broadcast %cst_16 : f32 to vector<8x2xf32>
    %36 = tpu.concatenate %35, %30, %15, %34, %35 in 1 : vector<8x2xf32>, vector<8x32xf32>, vector<8x128xf32>, vector<8x32xf32>, vector<8x2xf32> -> vector<8x196xf32>
    %37 = tpu.iota {dimensions = array<i32: 1>} : vector<1x128xi32>
    %c16_i32 = arith.constant 16 : i32
    %c0_i32_17 = arith.constant 0 : i32
    %38 = arith.cmpi eq, %c16_i32, %c0_i32_17 : i32
    %c1_i32_18 = arith.constant 1 : i32
    %39 = arith.select %38, %c1_i32_18, %c16_i32 : i32
    %40 = vector.broadcast %39 : i32 to vector<1x128xi32>
    %41 = arith.remsi %37, %40 : vector<1x128xi32>
    %c0_i32_19 = arith.constant 0 : i32
    %42 = vector.broadcast %c0_i32_19 : i32 to vector<1x128xi32>
    %43 = arith.cmpi ne, %41, %42 : vector<1x128xi32>
    %c0_i32_20 = arith.constant 0 : i32
    %44 = vector.broadcast %c0_i32_20 : i32 to vector<1x128xi32>
    %45 = arith.cmpi slt, %41, %44 : vector<1x128xi32>
    %c0_i32_21 = arith.constant 0 : i32
    %46 = arith.cmpi slt, %39, %c0_i32_21 : i32
    %47 = vector.broadcast %46 : i1 to vector<1x128xi1>
    %48 = vector.broadcast %47 : vector<1x128xi1> to vector<1x128xi1>
    %49 = arith.xori %45, %48 : vector<1x128xi1>
    %50 = arith.andi %49, %43 : vector<1x128xi1>
    %51 = vector.broadcast %39 : i32 to vector<1x128xi32>
    %52 = arith.addi %41, %51 : vector<1x128xi32>
    %53 = arith.select %50, %52, %41 : vector<1x128xi1>, vector<1x128xi32>
    %54 = vector.extract_strided_slice %36 {offsets = [0, 0], sizes = [8, 128], strides = [1, 1]} : vector<8x196xf32> to vector<8x128xf32>
    %c2_i32_22 = arith.constant 2 : i32
    %55 = vector.broadcast %c2_i32_22 : i32 to vector<1x128xi32>
    %56 = arith.cmpi sge, %53, %55 : vector<1x128xi32>
    %cst_23 = arith.constant 0.000000e+00 : f32
    %57 = vector.shape_cast %56 : vector<1x128xi1> to vector<1x128xi1>
    %58 = vector.broadcast %57 : vector<1x128xi1> to vector<8x128xi1>
    %59 = vector.broadcast %cst_23 : f32 to vector<8x128xf32>
    %60 = arith.select %58, %54, %59 : vector<8x128xi1>, vector<8x128xf32>
    %61 = vector.extract_strided_slice %36 {offsets = [0, 2], sizes = [8, 128], strides = [1, 1]} : vector<8x196xf32> to vector<8x128xf32>
    %62 = vector.extract_strided_slice %36 {offsets = [0, 4], sizes = [8, 128], strides = [1, 1]} : vector<8x196xf32> to vector<8x128xf32>
    %c14_i32 = arith.constant 14 : i32
    %63 = vector.broadcast %c14_i32 : i32 to vector<1x128xi32>
    %64 = arith.cmpi slt, %53, %63 : vector<1x128xi32>
    %cst_24 = arith.constant 0.000000e+00 : f32
    %65 = vector.shape_cast %64 : vector<1x128xi1> to vector<1x128xi1>
    %66 = vector.broadcast %65 : vector<1x128xi1> to vector<8x128xi1>
    %67 = vector.broadcast %cst_24 : f32 to vector<8x128xf32>
    %68 = arith.select %66, %62, %67 : vector<8x128xi1>, vector<8x128xf32>
    %69 = vector.extract_strided_slice %36 {offsets = [0, 32], sizes = [8, 128], strides = [1, 1]} : vector<8x196xf32> to vector<8x128xf32>
    %c2_i32_25 = arith.constant 2 : i32
    %70 = vector.broadcast %c2_i32_25 : i32 to vector<1x128xi32>
    %71 = arith.cmpi sge, %53, %70 : vector<1x128xi32>
    %cst_26 = arith.constant 0.000000e+00 : f32
    %72 = vector.shape_cast %71 : vector<1x128xi1> to vector<1x128xi1>
    %73 = vector.broadcast %72 : vector<1x128xi1> to vector<8x128xi1>
    %74 = vector.broadcast %cst_26 : f32 to vector<8x128xf32>
    %75 = arith.select %73, %69, %74 : vector<8x128xi1>, vector<8x128xf32>
    %76 = vector.extract_strided_slice %36 {offsets = [0, 34], sizes = [8, 128], strides = [1, 1]} : vector<8x196xf32> to vector<8x128xf32>
    %77 = vector.extract_strided_slice %36 {offsets = [0, 36], sizes = [8, 128], strides = [1, 1]} : vector<8x196xf32> to vector<8x128xf32>
    %c14_i32_27 = arith.constant 14 : i32
    %78 = vector.broadcast %c14_i32_27 : i32 to vector<1x128xi32>
    %79 = arith.cmpi slt, %53, %78 : vector<1x128xi32>
    %cst_28 = arith.constant 0.000000e+00 : f32
    %80 = vector.shape_cast %79 : vector<1x128xi1> to vector<1x128xi1>
    %81 = vector.broadcast %80 : vector<1x128xi1> to vector<8x128xi1>
    %82 = vector.broadcast %cst_28 : f32 to vector<8x128xf32>
    %83 = arith.select %81, %77, %82 : vector<8x128xi1>, vector<8x128xf32>
    %84 = vector.extract_strided_slice %36 {offsets = [0, 64], sizes = [8, 128], strides = [1, 1]} : vector<8x196xf32> to vector<8x128xf32>
    %c2_i32_29 = arith.constant 2 : i32
    %85 = vector.broadcast %c2_i32_29 : i32 to vector<1x128xi32>
    %86 = arith.cmpi sge, %53, %85 : vector<1x128xi32>
    %cst_30 = arith.constant 0.000000e+00 : f32
    %87 = vector.shape_cast %86 : vector<1x128xi1> to vector<1x128xi1>
    %88 = vector.broadcast %87 : vector<1x128xi1> to vector<8x128xi1>
    %89 = vector.broadcast %cst_30 : f32 to vector<8x128xf32>
    %90 = arith.select %88, %84, %89 : vector<8x128xi1>, vector<8x128xf32>
    %91 = vector.extract_strided_slice %36 {offsets = [0, 66], sizes = [8, 128], strides = [1, 1]} : vector<8x196xf32> to vector<8x128xf32>
    %92 = vector.extract_strided_slice %36 {offsets = [0, 68], sizes = [8, 128], strides = [1, 1]} : vector<8x196xf32> to vector<8x128xf32>
    %c14_i32_31 = arith.constant 14 : i32
    %93 = vector.broadcast %c14_i32_31 : i32 to vector<1x128xi32>
    %94 = arith.cmpi slt, %53, %93 : vector<1x128xi32>
    %cst_32 = arith.constant 0.000000e+00 : f32
    %95 = vector.shape_cast %94 : vector<1x128xi1> to vector<1x128xi1>
    %96 = vector.broadcast %95 : vector<1x128xi1> to vector<8x128xi1>
    %97 = vector.broadcast %cst_32 : f32 to vector<8x128xf32>
    %98 = arith.select %96, %92, %97 : vector<8x128xi1>, vector<8x128xf32>
    %99 = tpu.concatenate %60, %61, %68, %75, %76, %83, %90, %91, %98 in 0 : vector<8x128xf32>, vector<8x128xf32>, vector<8x128xf32>, vector<8x128xf32>, vector<8x128xf32>, vector<8x128xf32>, vector<8x128xf32>, vector<8x128xf32>, vector<8x128xf32> -> vector<72x128xf32>
    %c0_33 = arith.constant 0 : index
    %c0_34 = arith.constant 0 : index
    %100 = vector.load %arg5[%c0_33, %c0_34] : memref<8x72xf32, #tpu.memory_space<vmem>>, vector<8x72xf32>
    %cst_35 = arith.constant dense<0.000000e+00> : vector<8x128xf32>
    %101 = tpu.matmul %100, %99, %cst_35 {dimension_numbers = #tpu.dot_dimension_numbers<[1], [0], [0], [1], [0, 0, 1, 1], [], []>} : vector<8x72xf32>, vector<72x128xf32>, vector<8x128xf32> -> vector<8x128xf32>
    %102 = vector.shape_cast %101 : vector<8x128xf32> to vector<1x8x128xf32>
    %c0_36 = arith.constant 0 : index
    %c0_37 = arith.constant 0 : index
    %c0_38 = arith.constant 0 : index
    %103 = vector.load %arg8[%c0_36, %c0_37, %c0_38] : memref<1x8x128xf32, #tpu.memory_space<vmem>>, vector<1x8x128xf32>
    tpu.vector_store %arg8[%c0_36, %c0_37, %c0_38], %102 {strides = array<i32>} : memref<1x8x128xf32, #tpu.memory_space<vmem>>, vector<1x8x128xf32>,
    %cst_39 = arith.constant dense<0.000000e+00> : vector<8xf32>
    %104 = vector.multi_reduction <add>, %101, %cst_39 [1] : vector<8x128xf32> to vector<8xf32>
    %105 = vector.shape_cast %104 : vector<8xf32> to vector<8x1xf32>
    %106 = arith.mulf %101, %101 : vector<8x128xf32>
    %cst_40 = arith.constant dense<0.000000e+00> : vector<8xf32>
    %107 = vector.multi_reduction <add>, %106, %cst_40 [1] : vector<8x128xf32> to vector<8xf32>
    %108 = vector.shape_cast %107 : vector<8xf32> to vector<8x1xf32>
    %109 = tpu.concatenate %105, %108 in 1 : vector<8x1xf32>, vector<8x1xf32> -> vector<8x2xf32>
    %110 = vector.shape_cast %109 : vector<8x2xf32> to vector<1x1x8x2xf32>
    %c0_41 = arith.constant 0 : index
    %c0_42 = arith.constant 0 : index
    %c0_43 = arith.constant 0 : index
    %c0_44 = arith.constant 0 : index
    %111 = vector.load %arg9[%c0_41, %c0_42, %c0_43, %c0_44] : memref<1x1x8x2xf32, #tpu.memory_space<vmem>>, vector<1x1x8x2xf32>
    tpu.vector_store %arg9[%c0_41, %c0_42, %c0_43, %c0_44], %110 {strides = array<i32>} : memref<1x1x8x2xf32, #tpu.memory_space<vmem>>, vector<1x1x8x2xf32>,
    return
  }
  func.func @transform_0(%arg0: i32, %arg1: i32) -> (i32, i32, i32) {
    %c0_i32 = arith.constant 0 : i32
    %c0_i32_0 = arith.constant 0 : i32
    return %arg0, %c0_i32, %arg1 : i32, i32, i32
  }
  func.func @transform_1(%arg0: i32, %arg1: i32) -> (i32, i32, i32) {
    %c1_i32 = arith.constant 1 : i32
    %0 = arith.muli %arg1, %c1_i32 : i32
    %c1_i32_0 = arith.constant 1 : i32
    %1 = arith.subi %0, %c1_i32_0 : i32
    %c0_i32 = arith.constant 0 : i32
    %2 = arith.maxsi %1, %c0_i32 : i32
    %c0_i32_1 = arith.constant 0 : i32
    %c0_i32_2 = arith.constant 0 : i32
    return %arg0, %c0_i32_1, %2 : i32, i32, i32
  }
  func.func @transform_2(%arg0: i32, %arg1: i32) -> (i32, i32, i32) {
    %c1_i32 = arith.constant 1 : i32
    %0 = arith.addi %arg1, %c1_i32 : i32
    %c1_i32_0 = arith.constant 1 : i32
    %1 = arith.muli %0, %c1_i32_0 : i32
    %c1_i32_1 = arith.constant 1 : i32
    %2 = arith.minsi %1, %c1_i32_1 : i32
    %c0_i32 = arith.constant 0 : i32
    %c0_i32_2 = arith.constant 0 : i32
    return %arg0, %c0_i32, %2 : i32, i32, i32
  }
  func.func @transform_3(%arg0: i32, %arg1: i32) -> (i32, i32) {
    %c0_i32 = arith.constant 0 : i32
    %c0_i32_0 = arith.constant 0 : i32
    %c0_i32_1 = arith.constant 0 : i32
    return %c0_i32, %c0_i32_0 : i32, i32
  }
  func.func @transform_4(%arg0: i32, %arg1: i32) -> (i32, i32) {
    %c0_i32 = arith.constant 0 : i32
    %c0_i32_0 = arith.constant 0 : i32
    %c0_i32_1 = arith.constant 0 : i32
    return %c0_i32, %c0_i32_0 : i32, i32
  }
  func.func @transform_5(%arg0: i32, %arg1: i32) -> (i32, i32) {
    %c0_i32 = arith.constant 0 : i32
    %c0_i32_0 = arith.constant 0 : i32
    %c0_i32_1 = arith.constant 0 : i32
    return %c0_i32, %c0_i32_0 : i32, i32
  }
  func.func @transform_6(%arg0: i32, %arg1: i32) -> (i32, i32, i32) {
    %c0_i32 = arith.constant 0 : i32
    %c0_i32_0 = arith.constant 0 : i32
    return %arg0, %c0_i32, %arg1 : i32, i32, i32
  }
  func.func @transform_7(%arg0: i32, %arg1: i32) -> (i32, i32, i32, i32) {
    %c0_i32 = arith.constant 0 : i32
    %c0_i32_0 = arith.constant 0 : i32
    %c0_i32_1 = arith.constant 0 : i32
    return %arg0, %arg1, %c0_i32, %c0_i32_0 : i32, i32, i32, i32
  }
}

module attributes {stable_mosaic.version = 11 : i64} {
  func.func @_bn_act_kernel(%arg0: i32, %arg1: i32, %arg2: memref<1x8x128xf32, #tpu.memory_space<vmem>>, %arg3: memref<8x1xf32, #tpu.memory_space<vmem>>, %arg4: memref<8x1xf32, #tpu.memory_space<vmem>>, %arg5: memref<1x8x128xf32, #tpu.memory_space<vmem>>) attributes {dimension_semantics = [#tpu.dimension_semantics<parallel>, #tpu.dimension_semantics<parallel>], iteration_bounds = array<i64: 2, 2>, scalar_prefetch = 0 : i64, scratch_operands = 0 : i64, tpu.core_type = #tpu.core_type<tc>, window_params = [{transform_indices = @transform_0, window_bounds = array<i64: 1, 8, 128>}, {pipeline_mode = #tpu.pipeline_mode<synchronous>, transform_indices = @transform_1, window_bounds = array<i64: 8, 1>}, {pipeline_mode = #tpu.pipeline_mode<synchronous>, transform_indices = @transform_2, window_bounds = array<i64: 8, 1>}, {transform_indices = @transform_3, window_bounds = array<i64: 1, 8, 128>}]} {
    %c0 = arith.constant 0 : index
    %c0_0 = arith.constant 0 : index
    %c0_1 = arith.constant 0 : index
    %0 = vector.load %arg2[%c0, %c0_0, %c0_1] : memref<1x8x128xf32, #tpu.memory_space<vmem>>, vector<1x8x128xf32>
    %1 = vector.shape_cast %0 : vector<1x8x128xf32> to vector<8x128xf32>
    %c0_2 = arith.constant 0 : index
    %c0_3 = arith.constant 0 : index
    %2 = vector.load %arg3[%c0_2, %c0_3] : memref<8x1xf32, #tpu.memory_space<vmem>>, vector<8x1xf32>
    %3 = vector.broadcast %2 : vector<8x1xf32> to vector<8x128xf32>
    %4 = arith.mulf %1, %3 : vector<8x128xf32>
    %c0_4 = arith.constant 0 : index
    %c0_5 = arith.constant 0 : index
    %5 = vector.load %arg4[%c0_4, %c0_5] : memref<8x1xf32, #tpu.memory_space<vmem>>, vector<8x1xf32>
    %6 = vector.broadcast %5 : vector<8x1xf32> to vector<8x128xf32>
    %7 = arith.addf %4, %6 : vector<8x128xf32>
    %cst = arith.constant 0.000000e+00 : f32
    %8 = vector.broadcast %cst : f32 to vector<8x128xf32>
    %9 = arith.maximumf %7, %8 : vector<8x128xf32>
    %10 = vector.shape_cast %9 : vector<8x128xf32> to vector<1x8x128xf32>
    %c0_6 = arith.constant 0 : index
    %c0_7 = arith.constant 0 : index
    %c0_8 = arith.constant 0 : index
    %11 = vector.load %arg5[%c0_6, %c0_7, %c0_8] : memref<1x8x128xf32, #tpu.memory_space<vmem>>, vector<1x8x128xf32>
    tpu.vector_store %arg5[%c0_6, %c0_7, %c0_8], %10 {strides = array<i32>} : memref<1x8x128xf32, #tpu.memory_space<vmem>>, vector<1x8x128xf32>,
    return
  }
  func.func @transform_0(%arg0: i32, %arg1: i32) -> (i32, i32, i32) {
    %c0_i32 = arith.constant 0 : i32
    %c0_i32_0 = arith.constant 0 : i32
    return %arg0, %c0_i32, %arg1 : i32, i32, i32
  }
  func.func @transform_1(%arg0: i32, %arg1: i32) -> (i32, i32) {
    %c0_i32 = arith.constant 0 : i32
    %c0_i32_0 = arith.constant 0 : i32
    %c0_i32_1 = arith.constant 0 : i32
    return %c0_i32, %c0_i32_0 : i32, i32
  }
  func.func @transform_2(%arg0: i32, %arg1: i32) -> (i32, i32) {
    %c0_i32 = arith.constant 0 : i32
    %c0_i32_0 = arith.constant 0 : i32
    %c0_i32_1 = arith.constant 0 : i32
    return %c0_i32, %c0_i32_0 : i32, i32
  }
  func.func @transform_3(%arg0: i32, %arg1: i32) -> (i32, i32, i32) {
    %c0_i32 = arith.constant 0 : i32
    %c0_i32_0 = arith.constant 0 : i32
    return %arg0, %c0_i32, %arg1 : i32, i32, i32
  }
}

</mosaic_0001>

<llo_original>
// kernel: midscope_conv2d_block.3
$region0: #{midscope_conv2d_block.3}
  #allocation0 [shape = 'u32[]', space=smem, size = 0x4, offset = 0x4, fixed_abs, tag = 'smem constant byte address 0x4 - core index']
  #allocation1 [shape = 'u32[144,128]{1,0:T(1,128)}', space=vmem, size = 0x12000, scoped, tag = 'internal scratch']
  %s0 = inlined_call_operand.vmem [shape: f32[2,4,256], index: 0, kind: input, shape index: {}, may-alias: {0,1,2}]
  %s1 = inlined_call_operand.vmem [shape: f32[2,4,256], index: 1, kind: input, shape index: {}, may-alias: {0,1,2}]
  %s2 = inlined_call_operand.vmem [shape: f32[2,4,256], index: 2, kind: input, shape index: {}, may-alias: {0,1,2}]
  %s3 = inlined_call_operand.vmem [shape: f32[8,36], index: 3, kind: input, shape index: {}]
  %s4 = inlined_call_operand.vmem [shape: f32[4,1], index: 4, kind: input, shape index: {}, may-alias: {4,5}]
  %s5 = inlined_call_operand.vmem [shape: f32[4,1], index: 5, kind: input, shape index: {}, may-alias: {4,5}]
  %s6 = inlined_call_operand.vmem [shape: f32[2,8,256], index: 6, kind: output, shape index: {0}]
  %s7 = inlined_call_operand.vmem [shape: f32[2,2,8,2], index: 7, kind: output, shape index: {1}]
  %8 = xla_tuple %s6, %s7
  %s9 = sld [smem:[#allocation0]]
  $region65: #{midscope_conv2d_block.3} parent=0
    _
  %s11 = ssub.s32 1, %s9
  %s12 = scalar_select 0, %s11, %s9
  loop: start=0, step=1, limit=6
  $region2: #{midscope_conv2d_block.3} parent=0 // loop_pre_header
    _
  $region3: #{midscope_conv2d_block.3} parent=0 // loop_header
    %s14 = sphi 0, %s18
    %p15 = scmp.ge.s32.totalorder %s14, 6
    %s21 = sphi 0, %s33
    %s22 = sphi 0, %s29
    %s23 = sphi 0, %s21
    %s24 = sphi 0, %s22
    %s25 = sphi 0, %s23
    %s26 = sphi 0, %s24
    %s38 = sphi 0, %s40
    %s41 = sphi 0, %s38
    %s42 = sphi 0, %s41
    %s58 = sphi 0, %s42
    %s72 = sphi 0, %s74
    %s75 = sphi 0, %s72
    %s76 = sphi 0, %s75
    %s92 = sphi 0, %s76
    %s106 = sphi 0, %s108
    %s109 = sphi 0, %s106
    %s110 = sphi 0, %s109
    %s126 = sphi 0, %s110
    %s130 = sphi 0, %s130
    %s132 = sphi 0, %s130
    %s133 = sphi 0, %s132
    %s147 = sphi 0, %s133
    %s151 = sphi 0, %s151
    %s153 = sphi 0, %s151
    %s154 = sphi 0, %s153
    %s168 = sphi 0, %s154
    %s172 = sphi 0, %s172
    %s174 = sphi 0, %s172
    %s175 = sphi 0, %s174
    %s189 = sphi 0, %s175
    %s197 = sphi 0, %s199
    %s200 = sphi 0, %s197
    %s201 = sphi 0, %s200
    %s217 = sphi 0, %s201
    %s225 = sphi 0, %s227
    %s228 = sphi 0, %s225
    %s229 = sphi 0, %s228
    %s245 = sphi 0, %s229
  $region4: #{midscope_conv2d_block.3} parent=0 // loop_header_branch
    %17 = sbr.rel (%p15) target = $region8
  $region5: #{midscope_conv2d_block.3} parent=0 // loop_body
    %s19 = ssub.s32 %s14, 1
    %s20 = ssub.s32 %s14, 2
    %s27 = sadd.s32 1, %s22
    %p28 = scmp.ge.s32.totalorder %s27, 2
    %s29 = scalar_select %p28, 0, %s27
    %s30 = sadd.s32 1, %s21
    %s31 = scalar_select %p28, %s30, %s21
    %p32 = scmp.ge.s32.totalorder %s31, 2
    %s33 = scalar_select %p32, 0, %s31
    %s34 = ssub.s32 %s21, %s33
    %s35 = ssub.s32 %s22, %s29
    %s36 = sor.u32 %s34, %s35
    %p37 = scmp.eq.s32.totalorder %s36, 0
    %s39 = sadd.s32 %s38, 1
    %s40 = scalar_select %p37, %s38, %s39
    %p43 = pneg %p37
    %p44 = scmp.eq.s32.totalorder %s14, 3
    %p45 = por %p43, %p44
    %p46 = scmp.ne.s32.totalorder %s38, %s41
    %p47 = scmp.eq.s32.totalorder %s14, 0
    %p48 = por %p46, %p47
    %p49 = scmp.ne.s32.totalorder %s38, %s41
    %p50 = scmp.eq.s32.totalorder %s19, 3
    %p51 = por %p49, %p50
    %p52 = scmp.ne.s32.totalorder %s41, %s42
    %p53 = scmp.eq.s32.totalorder %s19, 0
    %p54 = por %p52, %p53
    %p55 = scmp.ne.s32.totalorder %s41, %s42
    %p56 = scmp.eq.s32.totalorder %s20, 3
    %p57 = por %p55, %p56
    %p59 = scmp.ne.s32.totalorder %s42, %s58
    %p60 = scmp.eq.s32.totalorder %s20, 0
    %p61 = por %p59, %p60
    %s62 = ssub.s32 %s22, 1
    %p63 = scmp.gt.s32.totalorder %s62, 0
    %s64 = scalar_select %p63, %s62, 0
    %s65 = ssub.s32 %s29, 1
    %p66 = scmp.gt.s32.totalorder %s65, 0
    %s67 = scalar_select %p66, %s65, 0
    %s68 = ssub.s32 %s21, %s33
    %s69 = ssub.s32 %s64, %s67
    %s70 = sor.u32 %s68, %s69
    %p71 = scmp.eq.s32.totalorder %s70, 0
    %s73 = sadd.s32 %s72, 1
    %s74 = scalar_select %p71, %s72, %s73
    %p77 = pneg %p71
    %p78 = scmp.eq.s32.totalorder %s14, 3
    %p79 = por %p77, %p78
    %p80 = scmp.ne.s32.totalorder %s72, %s75
    %p81 = scmp.eq.s32.totalorder %s14, 0
    %p82 = por %p80, %p81
    %p83 = scmp.ne.s32.totalorder %s72, %s75
    %p84 = scmp.eq.s32.totalorder %s19, 3
    %p85 = por %p83, %p84
    %p86 = scmp.ne.s32.totalorder %s75, %s76
    %p87 = scmp.eq.s32.totalorder %s19, 0
    %p88 = por %p86, %p87
    %p89 = scmp.ne.s32.totalorder %s75, %s76
    %p90 = scmp.eq.s32.totalorder %s20, 3
    %p91 = por %p89, %p90
    %p93 = scmp.ne.s32.totalorder %s76, %s92
    %p94 = scmp.eq.s32.totalorder %s20, 0
    %p95 = por %p93, %p94
    %s96 = sadd.s32 %s22, 1
    %p97 = scmp.lt.s32.totalorder %s96, 1
    %s98 = scalar_select %p97, %s96, 1
    %s99 = sadd.s32 %s29, 1
    %p100 = scmp.lt.s32.totalorder %s99, 1
    %s101 = scalar_select %p100, %s99, 1
    %s102 = ssub.s32 %s21, %s33
    %s103 = ssub.s32 %s98, %s101
    %s104 = sor.u32 %s102, %s103
    %p105 = scmp.eq.s32.totalorder %s104, 0
    %s107 = sadd.s32 %s106, 1
    %s108 = scalar_select %p105, %s106, %s107
    %p111 = pneg %p105
    %p112 = scmp.eq.s32.totalorder %s14, 3
    %p113 = por %p111, %p112
    %p114 = scmp.ne.s32.totalorder %s106, %s109
    %p115 = scmp.eq.s32.totalorder %s14, 0
    %p116 = por %p114, %p115
    %p117 = scmp.ne.s32.totalorder %s106, %s109
    %p118 = scmp.eq.s32.totalorder %s19, 3
    %p119 = por %p117, %p118
    %p120 = scmp.ne.s32.totalorder %s109, %s110
    %p121 = scmp.eq.s32.totalorder %s19, 0
    %p122 = por %p120, %p121
    %p123 = scmp.ne.s32.totalorder %s109, %s110
    %p124 = scmp.eq.s32.totalorder %s20, 3
    %p125 = por %p123, %p124
    %p127 = scmp.ne.s32.totalorder %s110, %s126
    %p128 = scmp.eq.s32.totalorder %s20, 0
    %p129 = por %p127, %p128
    %s131 = sadd.s32 %s130, 1
    %p134 = scmp.eq.s32.totalorder %s14, 3
    %p135 = scmp.ne.s32.totalorder %s130, %s132
    %p136 = scmp.eq.s32.totalorder %s14, 0
    %p137 = por %p135, %p136
    %p138 = scmp.ne.s32.totalorder %s130, %s132
    %p139 = scmp.eq.s32.totalorder %s19, 3
    %p140 = por %p138, %p139
    %p141 = scmp.ne.s32.totalorder %s132, %s133
    %p142 = scmp.eq.s32.totalorder %s19, 0
    %p143 = por %p141, %p142
    %p144 = scmp.ne.s32.totalorder %s132, %s133
    %p145 = scmp.eq.s32.totalorder %s20, 3
    %p146 = por %p144, %p145
    %p148 = scmp.ne.s32.totalorder %s133, %s147
    %p149 = scmp.eq.s32.totalorder %s20, 0
    %p150 = por %p148, %p149
    %s152 = sadd.s32 %s151, 1
    %p155 = scmp.eq.s32.totalorder %s14, 3
    %p156 = scmp.ne.s32.totalorder %s151, %s153
    %p157 = scmp.eq.s32.totalorder %s14, 0
    %p158 = por %p156, %p157
    %p159 = scmp.ne.s32.totalorder %s151, %s153
    %p160 = scmp.eq.s32.totalorder %s19, 3
    %p161 = por %p159, %p160
    %p162 = scmp.ne.s32.totalorder %s153, %s154
    %p163 = scmp.eq.s32.totalorder %s19, 0
    %p164 = por %p162, %p163
    %p165 = scmp.ne.s32.totalorder %s153, %s154
    %p166 = scmp.eq.s32.totalorder %s20, 3
    %p167 = por %p165, %p166
    %p169 = scmp.ne.s32.totalorder %s154, %s168
    %p170 = scmp.eq.s32.totalorder %s20, 0
    %p171 = por %p169, %p170
    %s173 = sadd.s32 %s172, 1
    %p176 = scmp.eq.s32.totalorder %s14, 3
    %p177 = scmp.ne.s32.totalorder %s172, %s174
    %p178 = scmp.eq.s32.totalorder %s14, 0
    %p179 = por %p177, %p178
    %p180 = scmp.ne.s32.totalorder %s172, %s174
    %p181 = scmp.eq.s32.totalorder %s19, 3
    %p182 = por %p180, %p181
    %p183 = scmp.ne.s32.totalorder %s174, %s175
    %p184 = scmp.eq.s32.totalorder %s19, 0
    %p185 = por %p183, %p184
    %p186 = scmp.ne.s32.totalorder %s174, %s175
    %p187 = scmp.eq.s32.totalorder %s20, 3
    %p188 = por %p186, %p187
    %p190 = scmp.ne.s32.totalorder %s175, %s189
    %p191 = scmp.eq.s32.totalorder %s20, 0
    %p192 = por %p190, %p191
    %s193 = ssub.s32 %s21, %s33
    %s194 = ssub.s32 %s22, %s29
    %s195 = sor.u32 %s193, %s194
    %p196 = scmp.eq.s32.totalorder %s195, 0
    %s198 = sadd.s32 %s197, 1
    %s199 = scalar_select %p196, %s197, %s198
    %p202 = pneg %p196
    %p203 = scmp.eq.s32.totalorder %s14, 3
    %p204 = por %p202, %p203
    %p205 = scmp.ne.s32.totalorder %s197, %s200
    %p206 = scmp.eq.s32.totalorder %s14, 0
    %p207 = por %p205, %p206
    %p208 = scmp.ne.s32.totalorder %s197, %s200
    %p209 = scmp.eq.s32.totalorder %s19, 3
    %p210 = por %p208, %p209
    %p211 = scmp.ne.s32.totalorder %s200, %s201
    %p212 = scmp.eq.s32.totalorder %s19, 0
    %p213 = por %p211, %p212
    %p214 = scmp.ne.s32.totalorder %s200, %s201
    %p215 = scmp.eq.s32.totalorder %s20, 3
    %p216 = por %p214, %p215
    %p218 = scmp.ne.s32.totalorder %s201, %s217
    %p219 = scmp.eq.s32.totalorder %s20, 0
    %p220 = por %p218, %p219
    %s221 = ssub.s32 %s21, %s33
    %s222 = ssub.s32 %s22, %s29
    %s223 = sor.u32 %s221, %s222
    %p224 = scmp.eq.s32.totalorder %s223, 0
    %s226 = sadd.s32 %s225, 1
    %s227 = scalar_select %p224, %s225, %s226
    %p230 = pneg %p224
    %p231 = scmp.eq.s32.totalorder %s14, 3
    %p232 = por %p230, %p231
    %p233 = scmp.ne.s32.totalorder %s225, %s228
    %p234 = scmp.eq.s32.totalorder %s14, 0
    %p235 = por %p233, %p234
    %p236 = scmp.ne.s32.totalorder %s225, %s228
    %p237 = scmp.eq.s32.totalorder %s19, 3
    %p238 = por %p236, %p237
    %p239 = scmp.ne.s32.totalorder %s228, %s229
    %p240 = scmp.eq.s32.totalorder %s19, 0
    %p241 = por %p239, %p240
    %p242 = scmp.ne.s32.totalorder %s228, %s229
    %p243 = scmp.eq.s32.totalorder %s20, 3
    %p244 = por %p242, %p243
    %p246 = scmp.ne.s32.totalorder %s229, %s245
    %p247 = scmp.eq.s32.totalorder %s20, 0
    %p248 = por %p246, %p247
    %p249 = scmp.le.s32.totalorder 1, %s14
    %p250 = scmp.lt.s32.totalorder %s14, 5
    %p251 = pnand %p249, %p250
    %p252 = pneg %p251
    // Predicated region
    $region9: #{midscope_conv2d_block.3} parent=5 // pred_check
      _
    $region10: #{midscope_conv2d_block.3} parent=5 // pred_check_branch
      %254 = sbr.rel (%p251) target = $region12
    $region11: #{midscope_conv2d_block.3} parent=5 // pred_region
      %s255 = ssub.s32 %s14, 1
      // Predicated region
      $region13: #{midscope_conv2d_block.3} parent=11 // pred_check
        %p256 = pneg %p143
      $region14: #{midscope_conv2d_block.3} parent=11 // pred_check_branch
        %258 = sbr.rel (%p256) target = $region16
      $region15: #{midscope_conv2d_block.3} parent=11 // pred_region
        _
      $region16: #{midscope_conv2d_block.3} parent=11 // pred_fallthru
        _
      // Predicated region
      $region17: #{midscope_conv2d_block.3} parent=11 // pred_check
        %p259 = pneg %p164
      $region18: #{midscope_conv2d_block.3} parent=11 // pred_check_branch
        %261 = sbr.rel (%p259) target = $region20
      $region19: #{midscope_conv2d_block.3} parent=11 // pred_region
        _
      $region20: #{midscope_conv2d_block.3} parent=11 // pred_fallthru
        _
      // Predicated region
      $region21: #{midscope_conv2d_block.3} parent=11 // pred_check
        %p262 = pneg %p185
      $region22: #{midscope_conv2d_block.3} parent=11 // pred_check_branch
        %264 = sbr.rel (%p262) target = $region24
      $region23: #{midscope_conv2d_block.3} parent=11 // pred_region
        _
      $region24: #{midscope_conv2d_block.3} parent=11 // pred_fallthru
        _
    $region12: #{midscope_conv2d_block.3} parent=5 // pred_fallthru
      _
    %p265 = scmp.lt.s32.totalorder %s14, 4
    // Predicated region
    $region25: #{midscope_conv2d_block.3} parent=5 // pred_check
      %p266 = pneg %p265
    $region26: #{midscope_conv2d_block.3} parent=5 // pred_check_branch
      %268 = sbr.rel (%p266) target = $region28
    $region27: #{midscope_conv2d_block.3} parent=5 // pred_region
      // Predicated region
      $region29: #{midscope_conv2d_block.3} parent=27 // pred_check
        %p269 = pneg %p48
      $region30: #{midscope_conv2d_block.3} parent=27 // pred_check_branch
        %271 = sbr.rel (%p269) target = $region32
      $region31: #{midscope_conv2d_block.3} parent=27 // pred_region
        %p272 = scmp.lt.s32.totalorder %s21, 1
        %s273 = scalar_select %p272, %s21, 1
        %p274 = scmp.lt.s32.totalorder %s22, 1
        %s275 = scalar_select %p274, %s22, 1
        %s276 = smul.addr %s273, 2
        %s277 = sadd.s32 %s275, %s276
        %s278 = smul.addr %s277, 4
        %s279 = scalar_lea.vmem %s0, %s278
      $region32: #{midscope_conv2d_block.3} parent=27 // pred_fallthru
        _
      // Predicated region
      $region33: #{midscope_conv2d_block.3} parent=27 // pred_check
        %p280 = pneg %p82
      $region34: #{midscope_conv2d_block.3} parent=27 // pred_check_branch
        %282 = sbr.rel (%p280) target = $region36
      $region35: #{midscope_conv2d_block.3} parent=27 // pred_region
        %s283 = ssub.s32 %s22, 1
        %p284 = scmp.gt.s32.totalorder %s283, 0
        %s285 = scalar_select %p284, %s283, 0
        %p286 = scmp.lt.s32.totalorder %s21, 1
        %s287 = scalar_select %p286, %s21, 1
        %p288 = scmp.lt.s32.totalorder %s285, 1
        %s289 = scalar_select %p288, %s285, 1
        %s290 = smul.addr %s287, 2
        %s291 = sadd.s32 %s289, %s290
        %s292 = smul.addr %s291, 4
        %s293 = scalar_lea.vmem %s1, %s292
        %s294 = ssub.s32 %s22, 1
        %p295 = scmp.gt.s32.totalorder %s294, 0
        %s296 = scalar_select %p295, %s294, 0
      $region36: #{midscope_conv2d_block.3} parent=27 // pred_fallthru
        _
      // Predicated region
      $region37: #{midscope_conv2d_block.3} parent=27 // pred_check
        %p297 = pneg %p116
      $region38: #{midscope_conv2d_block.3} parent=27 // pred_check_branch
        %299 = sbr.rel (%p297) target = $region40
      $region39: #{midscope_conv2d_block.3} parent=27 // pred_region
        %s300 = sadd.s32 %s22, 1
        %p301 = scmp.lt.s32.totalorder %s300, 1
        %s302 = scalar_select %p301, %s300, 1
        %p303 = scmp.lt.s32.totalorder %s21, 1
        %s304 = scalar_select %p303, %s21, 1
        %p305 = scmp.lt.s32.totalorder %s302, 1
        %s306 = scalar_select %p305, %s302, 1
        %s307 = smul.addr %s304, 2
        %s308 = sadd.s32 %s306, %s307
        %s309 = smul.addr %s308, 4
        %s310 = scalar_lea.vmem %s2, %s309
        %s311 = sadd.s32 %s22, 1
        %p312 = scmp.lt.s32.totalorder %s311, 1
        %s313 = scalar_select %p312, %s311, 1
      $region40: #{midscope_conv2d_block.3} parent=27 // pred_fallthru
        _
    $region28: #{midscope_conv2d_block.3} parent=5 // pred_fallthru
      _
    %p314 = scmp.le.s32.totalorder 1, %s14
    %p315 = scmp.lt.s32.totalorder %s14, 5
    %p316 = pnand %p314, %p315
    %p317 = pneg %p316
    // Predicated region
    $region41: #{midscope_conv2d_block.3} parent=5 // pred_check
      _
    $region42: #{midscope_conv2d_block.3} parent=5 // pred_check_branch
      %319 = sbr.rel (%p316) target = $region44
    $region43: #{midscope_conv2d_block.3} parent=5 // pred_region
      %s320 = ssub.s32 %s14, 1
      %p321 = scmp.lt.s32.totalorder %s23, 1
      %s322 = scalar_select %p321, %s23, 1
      %p323 = scmp.lt.s32.totalorder %s24, 1
      %s324 = scalar_select %p323, %s24, 1
      %s325 = smul.addr %s322, 2
      %s326 = sadd.s32 %s324, %s325
      %s327 = smul.addr %s326, 4
      %s328 = scalar_lea.vmem %s0, %s327
      %p329 = pneg %p54
      %p330 = pneg %p51
      %s331 = ssub.s32 %s24, 1
      %p332 = scmp.gt.s32.totalorder %s331, 0
      %s333 = scalar_select %p332, %s331, 0
      %p334 = scmp.lt.s32.totalorder %s23, 1
      %s335 = scalar_select %p334, %s23, 1
      %p336 = scmp.lt.s32.totalorder %s333, 1
      %s337 = scalar_select %p336, %s333, 1
      %s338 = smul.addr %s335, 2
      %s339 = sadd.s32 %s337, %s338
      %s340 = smul.addr %s339, 4
      %s341 = scalar_lea.vmem %s1, %s340
      %p342 = pneg %p88
      %p343 = pneg %p85
      %s344 = sadd.s32 %s24, 1
      %p345 = scmp.lt.s32.totalorder %s344, 1
      %s346 = scalar_select %p345, %s344, 1
      %p347 = scmp.lt.s32.totalorder %s23, 1
      %s348 = scalar_select %p347, %s23, 1
      %p349 = scmp.lt.s32.totalorder %s346, 1
      %s350 = scalar_select %p349, %s346, 1
      %s351 = smul.addr %s348, 2
      %s352 = sadd.s32 %s350, %s351
      %s353 = smul.addr %s352, 4
      %s354 = scalar_lea.vmem %s2, %s353
      %p355 = pneg %p122
      %p356 = pneg %p119
      %p357 = pneg %p143
      %p358 = pneg %p140
      %p359 = pneg %p164
      %p360 = pneg %p161
      %p361 = pneg %p185
      %p362 = pneg %p182
      %p363 = pneg %p213
      %p364 = pneg %p210
      %p365 = scmp.lt.s32.totalorder %s23, 1
      %s366 = scalar_select %p365, %s23, 1
      %p367 = scmp.lt.s32.totalorder %s24, 1
      %s368 = scalar_select %p367, %s24, 1
      %s369 = smul.addr %s366, 2
      %s370 = sadd.s32 %s368, %s369
      %s371 = smul.addr %s370, 8
      %s372 = scalar_lea.vmem %s6, %s371
      %p373 = pneg %p241
      %p374 = pneg %p238
      %p375 = scmp.lt.s32.totalorder %s23, 1
      %s376 = scalar_select %p375, %s23, 1
      %p377 = scmp.lt.s32.totalorder %s24, 1
      %s378 = scalar_select %p377, %s24, 1
      %s379 = smul.addr %s376, 2
      %s380 = sadd.s32 %s378, %s379
      %s381 = smul.addr %s380, 8
      %s382 = scalar_lea.vmem %s7, %s381
      %p383 = scmp.lt.s32.totalorder %s23, 1
      %s384 = scalar_select %p383, %s23, 1
      %p385 = scmp.lt.s32.totalorder %s24, 1
      %s386 = scalar_select %p385, %s24, 1
      %s387 = smul.addr %s384, 2
      %s388 = sadd.s32 %s386, %s387
      %s389 = smul.addr %s388, 4
      %s390 = scalar_lea.vmem %s0, %s389
      %s391 = ssub.s32 %s24, 1
      %p392 = scmp.gt.s32.totalorder %s391, 0
      %s393 = scalar_select %p392, %s391, 0
      %p394 = scmp.lt.s32.totalorder %s23, 1
      %s395 = scalar_select %p394, %s23, 1
      %p396 = scmp.lt.s32.totalorder %s393, 1
      %s397 = scalar_select %p396, %s393, 1
      %s398 = smul.addr %s395, 2
      %s399 = sadd.s32 %s397, %s398
      %s400 = smul.addr %s399, 4
      %s401 = scalar_lea.vmem %s1, %s400
      %s402 = ssub.s32 %s24, 1
      %p403 = scmp.gt.s32.totalorder %s402, 0
      %s404 = scalar_select %p403, %s402, 0
      %s405 = sadd.s32 %s24, 1
      %p406 = scmp.lt.s32.totalorder %s405, 1
      %s407 = scalar_select %p406, %s405, 1
      %p408 = scmp.lt.s32.totalorder %s23, 1
      %s409 = scalar_select %p408, %s23, 1
      %p410 = scmp.lt.s32.totalorder %s407, 1
      %s411 = scalar_select %p410, %s407, 1
      %s412 = smul.addr %s409, 2
      %s413 = sadd.s32 %s411, %s412
      %s414 = smul.addr %s413, 4
      %s415 = scalar_lea.vmem %s2, %s414
      %s416 = sadd.s32 %s24, 1
      %p417 = scmp.lt.s32.totalorder %s416, 1
      %s418 = scalar_select %p417, %s416, 1
      %p419 = scmp.lt.s32.totalorder %s23, 1
      %s420 = scalar_select %p419, %s23, 1
      %p421 = scmp.lt.s32.totalorder %s24, 1
      %s422 = scalar_select %p421, %s24, 1
      %s423 = smul.addr %s420, 2
      %s424 = sadd.s32 %s422, %s423
      %s425 = smul.addr %s424, 8
      %s426 = scalar_lea.vmem %s6, %s425
      %p427 = scmp.lt.s32.totalorder %s23, 1
      %s428 = scalar_select %p427, %s23, 1
      %p429 = scmp.lt.s32.totalorder %s24, 1
      %s430 = scalar_select %p429, %s24, 1
      %s431 = smul.addr %s428, 2
      %s432 = sadd.s32 %s430, %s431
      %s433 = smul.addr %s432, 8
      %s434 = scalar_lea.vmem %s7, %s433
      %v435 = vld [vmem:[%s390] sm:$0xf]
      %v436 = vld [vmem:[%s401] sm:$0xf]
      %v437 = vld [vmem:[%s415] sm:$0xf]
      %p438 = scmp.gt.s32.totalorder %s24, 0
      %s439 = scalar_select %p438, 1, 0
      %v440 = vstv %s439
      %vm441 = vcmp.eq.s32.totalorder %v440, 1
      %v442 = vsel %vm441, %v436, 0.0
      %s443 = sadd.s32 %s24, 1
      %p444 = scmp.lt.s32.totalorder %s443, 2
      %s445 = scalar_select %p444, 1, 0
      %v446 = vstv %s445
      %vm447 = vcmp.eq.s32.totalorder %v446, 1
      %v448 = vsel %vm447, %v437, 0.0
      %450 = vrot.lane.b32.xlu0 %v442, 17
      %v451 = vpop.permute.xlu0 %450
      %454 = vrot.lane.b32.xlu0 %v435, 17
      %v455 = vpop.permute.xlu0 %454
      %458 = vrot.lane.b32.xlu0 %v448, 17
      %v459 = vpop.permute.xlu0 %458
      %vm461 = vcmask 7168
      %v462 = vsel %vm461, 0.0, %v451
      %vm463 = vcmask 138240
      %v464 = vsel %vm463, %v462, %v455
      %v465 = vsel %vm463, %v455, %v459
      %vm466 = vcmask 269312
      %v467 = vsel %vm466, %v465, 0.0
      %v468 = vlaneseq
      %v469 = vand.u32 %v468, 127
      %vm470 = vcmp.lt.s32.totalorder %v469, 0
      %v471 = vsub.s32 0, %v469
      %v472 = vsel %vm470, %v471, %v469
      %v473 = vshrl.u32 %v472, 4
      %v474 = vand.u32 %v472, 15
      %v475 = vsub.s32 0, %v474
      %v476 = vsel %vm470, %v475, %v474
      %vm477 = vcmp.ne.s32.totalorder %v476, 0
      %vm478 = vcmp.lt.s32.totalorder %v476, 0
      %vm479 = vmand %vm478, %vm477
      %v480 = vadd.s32 %v476, 16
      %v481 = vsel %vm479, %v480, %v476
      %vm482 = vcmp.ge.s32.totalorder %v481, 1
      %v483 = vsel %vm482, 1, 0
      %vm484 = vcmp.eq.s32.totalorder %v483, 1
      %v485 = vsel %vm484, %v464, 0.0
      %vm486 = vcmp.lt.s32.totalorder %v481, 15
      %v487 = vsel %vm486, 1, 0
      %vm488 = vcmp.eq.s32.totalorder %v487, 1
      %491 = vrot.lane.b32.xlu0 %v464, 126
      %v492 = vpop.permute.xlu0 %491
      %493 = vrot.lane.b32.xlu0 %v467, 126
      %v494 = vpop.permute.xlu0 %493
      %vm495 = vcmask 1031168
      %v496 = vsel %vm495, %v492, %v494
      %v498 = vsel %vm488, %v496, 0.0
      %499 = vrot.lane.b32.xlu0 %v464, 112
      %v500 = vpop.permute.xlu0 %499
      %501 = vrot.lane.b32.xlu0 %v467, 112
      %v502 = vpop.permute.xlu0 %501
      %vm503 = vcmask 916480
      %v504 = vsel %vm503, %v500, %v502
      %v506 = vsel %vm484, %v504, 0.0
      %507 = vrot.lane.b32.xlu0 %v464, 110
      %v508 = vpop.permute.xlu0 %507
      %509 = vrot.lane.b32.xlu0 %v467, 110
      %v510 = vpop.permute.xlu0 %509
      %vm511 = vcmask 900096
      %v512 = vsel %vm511, %v508, %v510
      %v514 = vsel %vm488, %v512, 0.0
      %515 = vrot.lane.b32.xlu0 %v464, 96
      %v516 = vpop.permute.xlu0 %515
      %517 = vrot.lane.b32.xlu0 %v467, 96
      %v518 = vpop.permute.xlu0 %517
      %vm519 = vcmask 785408
      %v520 = vsel %vm519, %v516, %v518
      %v522 = vsel %vm484, %v520, 0.0
      %523 = vrot.lane.b32.xlu0 %v464, 94
      %v524 = vpop.permute.xlu0 %523
      %525 = vrot.lane.b32.xlu0 %v467, 94
      %v526 = vpop.permute.xlu0 %525
      %vm527 = vcmask 769024
      %v528 = vsel %vm527, %v524, %v526
      %v530 = vsel %vm488, %v528, 0.0
      %v531 = vrot.slane %v464, 4
      %v532 = vrot.slane %v467, 4
      %533 = vrot.lane.b32.xlu0 %v531, 127
      %v534 = vpop.permute.xlu0 %533
      %535 = vrot.lane.b32.xlu0 %v532, 127
      %v536 = vpop.permute.xlu0 %535
      %vm537 = vcmask 1039360
      %v538 = vsel %vm537, %v534, %v536
      %v541 = vrot.slane %v506, 4
      %543 = vrot.lane.b32.xlu0 %v464, 111
      %v544 = vpop.permute.xlu0 %543
      %545 = vrot.lane.b32.xlu0 %v467, 111
      %v546 = vpop.permute.xlu0 %545
      %vm547 = vcmask 908288
      %v548 = vsel %vm547, %v544, %v546
      %v551 = vrot.slane %v514, 4
      %553 = vrot.lane.b32.xlu0 %v531, 95
      %v554 = vpop.permute.xlu0 %553
      %555 = vrot.lane.b32.xlu0 %v532, 95
      %v556 = vpop.permute.xlu0 %555
      %vm557 = vcmask 777216
      %v558 = vsel %vm557, %v554, %v556
      %vm560 = vcmask 1043456
      %v561 = vsel %vm560, %v485, %v538
      %v562 = vsel %vm560, %v498, %v541
      %v563 = vsel %vm560, %v548, %v551
      %v564 = vsel %vm560, %v522, %v558
      %v565 = vld [vmem:[%s3] sm:$0xff]
      %vm566 = vcmask 293888
      %v568 = vsel %vm566, %v565, 0
      %v571 = vsel %vm560, %v530, 0
      %573 = vmatprep.subr.mxu0 0.0
      %574 = vmatpush1.msra.mxu0 0.0
      %575 = vmatprep.subr.mxu0 0.0
      %576 = vmatpush1.msra.mxu0 0.0
      %577 = vmatprep.subr.mxu0 0.0
      %578 = vmatpush1.msra.mxu0 0.0
      %579 = vmatprep.subr.mxu0 0.0
      %580 = vmatpush1.msra.mxu0 0.0
      %581 = vmatprep.subr.mxu0 0.0
      %582 = vmatpush1.msra.mxu0 0.0
      %583 = vmatprep.subr.mxu0 0.0
      %584 = vmatpush1.msra.mxu0 0.0
      %585 = vmatprep.subr.mxu0 0.0
      %586 = vmatpush1.msra.mxu0 0.0
      %587 = vmatprep.subr.mxu0 0.0
      %588 = vmatpush1.msra.mxu0 0.0
      %589 = vmatprep.subr.mxu0 0.0
      %590 = vmatpush1.msra.mxu0 0.0
      %591 = vmatprep.subr.mxu0 0.0
      %592 = vmatpush1.msra.mxu0 0.0
      %593 = vmatprep.subr.mxu0 0.0
      %594 = vmatpush1.msra.mxu0 0.0
      %595 = vmatprep.subr.mxu0 0.0
      %596 = vmatpush1.msra.mxu0 %v571
      %597 = vmatprep.subr.mxu0 0.0
      %598 = vmatpush1.msra.mxu0 %v564
      %599 = vmatprep.subr.mxu0 0.0
      %600 = vmatpush1.msra.mxu0 %v563
      %601 = vmatprep.subr.mxu0 0.0
      %602 = vmatpush1.msra.mxu0 %v562
      %603 = vmatprep.subr.mxu0 0.0
      %604 = vmatpush1.msra.mxu0 %v561
      %605 = vmatprep.subr.mxu0 0.0
      %606 = vmatpush2.msra.mxu0 0.0
      %607 = vmatprep.subr.mxu0 0.0
      %608 = vmatpush2.msra.mxu0 0.0
      %609 = vmatprep.subr.mxu0 0.0
      %610 = vmatpush2.msra.mxu0 0.0
      %611 = vmatprep.subr.mxu0 0.0
      %612 = vmatpush2.msra.mxu0 0.0
      %613 = vmatprep.subr.mxu0 0.0
      %614 = vmatpush2.msra.mxu0 0.0
      %615 = vmatprep.subr.mxu0 0.0
      %616 = vmatpush2.msra.mxu0 0.0
      %617 = vmatprep.subr.mxu0 0.0
      %618 = vmatpush2.msra.mxu0 0.0
      %619 = vmatprep.subr.mxu0 0.0
      %620 = vmatpush2.msra.mxu0 0.0
      %621 = vmatprep.subr.mxu0 0.0
      %622 = vmatpush2.msra.mxu0 0.0
      %623 = vmatprep.subr.mxu0 0.0
      %624 = vmatpush2.msra.mxu0 0.0
      %625 = vmatprep.subr.mxu0 0.0
      %626 = vmatpush2.msra.mxu0 0.0
      %627 = vmatprep.subr.mxu0 0.0
      %628 = vmatpush2.msra.mxu0 0.0
      %629 = vmatprep.subr.mxu0 0.0
      %630 = vmatpush2.msra.mxu0 0.0
      %631 = vmatprep.subr.mxu0 0.0
      %632 = vmatpush2.msra.mxu0 0.0
      %633 = vmatprep.subr.mxu0 0.0
      %634 = vmatpush2.msra.mxu0 0.0
      %635 = vmatprep.subr.mxu0 0.0
      %636 = vmatpush2.msra.mxu0 0.0
      %637 = vmatprep.mubr.f32.mxu0 0.0
      %638 = vmatmul.mubr.f32.gmra.mxu0 %v568
      %v639 = vpop.f32.mrf.mxu0
      %v640 = vadd.f32 0.0, %v639
      %v641 = vpop.f32.mrf.mxu0
      %642 = vdwg.mxu0
      %643 = vst [vmem:[%s426] sm:$0xff] %v640
      %644 = vadd.xlane.f32.xlu0 %v640
      %v645 = vpop.xlane.xlu0 %644
      %v646 = vmul.f32 %v640, %v640
      %647 = vadd.xlane.f32.xlu0 %v646
      %v648 = vpop.xlane.xlu0 %647
      %v649 = vsel %vm461, %v645, %v648
      %vm650 = vcmask 15360
      %651 = vst.msk [vmem:[%s434] sm:$0xff] %vm650, %v649
      %p652 = scmp.lt.s32.totalorder %s23, 1
      %s653 = scalar_select %p652, %s23, 1
      %p654 = scmp.lt.s32.totalorder %s24, 1
      %s655 = scalar_select %p654, %s24, 1
      %s656 = smul.addr %s653, 2
      %s657 = sadd.s32 %s655, %s656
      %s658 = smul.addr %s657, 8
      %s659 = scalar_lea.vmem %s6, %s658
      %p660 = scmp.lt.s32.totalorder %s23, 1
      %s661 = scalar_select %p660, %s23, 1
      %p662 = scmp.lt.s32.totalorder %s24, 1
      %s663 = scalar_select %p662, %s24, 1
      %s664 = smul.addr %s661, 2
      %s665 = sadd.s32 %s663, %s664
      %s666 = smul.addr %s665, 8
      %s667 = scalar_lea.vmem %s7, %s666
      // Predicated region
      $region45: #{midscope_conv2d_block.3} parent=43 // pred_check
        %p668 = pneg %p210
      $region46: #{midscope_conv2d_block.3} parent=43 // pred_check_branch
        %670 = sbr.rel (%p668) target = $region48
      $region47: #{midscope_conv2d_block.3} parent=43 // pred_region
        _
      $region48: #{midscope_conv2d_block.3} parent=43 // pred_fallthru
        _
      // Predicated region
      $region49: #{midscope_conv2d_block.3} parent=43 // pred_check
        %p671 = pneg %p238
      $region50: #{midscope_conv2d_block.3} parent=43 // pred_check_branch
        %673 = sbr.rel (%p671) target = $region52
      $region51: #{midscope_conv2d_block.3} parent=43 // pred_region
        _
      $region52: #{midscope_conv2d_block.3} parent=43 // pred_fallthru
        _
    $region44: #{midscope_conv2d_block.3} parent=5 // pred_fallthru
      _
    %p674 = scmp.le.s32.totalorder 2, %s14
    // Predicated region
    $region53: #{midscope_conv2d_block.3} parent=5 // pred_check
      %p675 = pneg %p674
    $region54: #{midscope_conv2d_block.3} parent=5 // pred_check_branch
      %677 = sbr.rel (%p675) target = $region56
    $region55: #{midscope_conv2d_block.3} parent=5 // pred_region
      %s678 = ssub.s32 %s14, 2
      // Predicated region
      $region57: #{midscope_conv2d_block.3} parent=55 // pred_check
        %p679 = pneg %p216
      $region58: #{midscope_conv2d_block.3} parent=55 // pred_check_branch
        %681 = sbr.rel (%p679) target = $region60
      $region59: #{midscope_conv2d_block.3} parent=55 // pred_region
        %p682 = scmp.lt.s32.totalorder %s25, 1
        %s683 = scalar_select %p682, %s25, 1
        %p684 = scmp.lt.s32.totalorder %s26, 1
        %s685 = scalar_select %p684, %s26, 1
        %s686 = smul.addr %s683, 2
        %s687 = sadd.s32 %s685, %s686
        %s688 = smul.addr %s687, 8
        %s689 = scalar_lea.vmem %s6, %s688
      $region60: #{midscope_conv2d_block.3} parent=55 // pred_fallthru
        _
      // Predicated region
      $region61: #{midscope_conv2d_block.3} parent=55 // pred_check
        %p690 = pneg %p244
      $region62: #{midscope_conv2d_block.3} parent=55 // pred_check_branch
        %692 = sbr.rel (%p690) target = $region64
      $region63: #{midscope_conv2d_block.3} parent=55 // pred_region
        %p693 = scmp.lt.s32.totalorder %s25, 1
        %s694 = scalar_select %p693, %s25, 1
        %p695 = scmp.lt.s32.totalorder %s26, 1
        %s696 = scalar_select %p695, %s26, 1
        %s697 = smul.addr %s694, 2
        %s698 = sadd.s32 %s696, %s697
        %s699 = smul.addr %s698, 8
        %s700 = scalar_lea.vmem %s7, %s699
      $region64: #{midscope_conv2d_block.3} parent=55 // pred_fallthru
        _
    $region56: #{midscope_conv2d_block.3} parent=5 // pred_fallthru
      _
  $region6: #{midscope_conv2d_block.3} parent=0 // loop_footer
    %s18 = sadd.s32 1, %s14
  $region7: #{midscope_conv2d_block.3} parent=0 // loop_footer_branch
    %13 = sbr.rel target = $region3
  $region8: #{midscope_conv2d_block.3} parent=0 // loop_exit
    _

// kernel: midscope_conv2d_block.5
$region0: #{midscope_conv2d_block.5}
  #allocation0 [shape = 'u32[]', space=smem, size = 0x4, offset = 0x4, fixed_abs, tag = 'smem constant byte address 0x4 - core index']
  #allocation1 [shape = 'u32[144,128]{1,0:T(1,128)}', space=vmem, size = 0x12000, scoped, tag = 'internal scratch']
  %s0 = inlined_call_operand.vmem [shape: f32[2,8,256], index: 0, kind: input, shape index: {}]
  %s1 = inlined_call_operand.vmem [shape: f32[8,1], index: 1, kind: input, shape index: {}]
  %s2 = inlined_call_operand.vmem [shape: f32[8,1], index: 2, kind: input, shape index: {}]
  %s3 = inlined_call_operand.vmem [shape: f32[2,8,256], index: 3, kind: output, shape index: {}]
  %s4 = sld [smem:[#allocation0]]
  $region45: #{midscope_conv2d_block.5} parent=0
    _
  %s6 = ssub.s32 1, %s4
  %s7 = scalar_select 0, %s6, %s4
  loop: start=0, step=1, limit=6
  $region2: #{midscope_conv2d_block.5} parent=0 // loop_pre_header
    _
  $region3: #{midscope_conv2d_block.5} parent=0 // loop_header
    %s9 = sphi 0, %s13
    %p10 = scmp.ge.s32.totalorder %s9, 6
    %s16 = sphi 0, %s28
    %s17 = sphi 0, %s24
    %s18 = sphi 0, %s16
    %s19 = sphi 0, %s17
    %s20 = sphi 0, %s18
    %s21 = sphi 0, %s19
    %s33 = sphi 0, %s35
    %s36 = sphi 0, %s33
    %s37 = sphi 0, %s36
    %s53 = sphi 0, %s37
    %s57 = sphi 0, %s57
    %s59 = sphi 0, %s57
    %s60 = sphi 0, %s59
    %s74 = sphi 0, %s60
    %s78 = sphi 0, %s78
    %s80 = sphi 0, %s78
    %s81 = sphi 0, %s80
    %s95 = sphi 0, %s81
    %s103 = sphi 0, %s105
    %s106 = sphi 0, %s103
    %s107 = sphi 0, %s106
    %s123 = sphi 0, %s107
  $region4: #{midscope_conv2d_block.5} parent=0 // loop_header_branch
    %12 = sbr.rel (%p10) target = $region8
  $region5: #{midscope_conv2d_block.5} parent=0 // loop_body
    %s14 = ssub.s32 %s9, 1
    %s15 = ssub.s32 %s9, 2
    %s22 = sadd.s32 1, %s17
    %p23 = scmp.ge.s32.totalorder %s22, 2
    %s24 = scalar_select %p23, 0, %s22
    %s25 = sadd.s32 1, %s16
    %s26 = scalar_select %p23, %s25, %s16
    %p27 = scmp.ge.s32.totalorder %s26, 2
    %s28 = scalar_select %p27, 0, %s26
    %s29 = ssub.s32 %s16, %s28
    %s30 = ssub.s32 %s17, %s24
    %s31 = sor.u32 %s29, %s30
    %p32 = scmp.eq.s32.totalorder %s31, 0
    %s34 = sadd.s32 %s33, 1
    %s35 = scalar_select %p32, %s33, %s34
    %p38 = pneg %p32
    %p39 = scmp.eq.s32.totalorder %s9, 3
    %p40 = por %p38, %p39
    %p41 = scmp.ne.s32.totalorder %s33, %s36
    %p42 = scmp.eq.s32.totalorder %s9, 0
    %p43 = por %p41, %p42
    %p44 = scmp.ne.s32.totalorder %s33, %s36
    %p45 = scmp.eq.s32.totalorder %s14, 3
    %p46 = por %p44, %p45
    %p47 = scmp.ne.s32.totalorder %s36, %s37
    %p48 = scmp.eq.s32.totalorder %s14, 0
    %p49 = por %p47, %p48
    %p50 = scmp.ne.s32.totalorder %s36, %s37
    %p51 = scmp.eq.s32.totalorder %s15, 3
    %p52 = por %p50, %p51
    %p54 = scmp.ne.s32.totalorder %s37, %s53
    %p55 = scmp.eq.s32.totalorder %s15, 0
    %p56 = por %p54, %p55
    %s58 = sadd.s32 %s57, 1
    %p61 = scmp.eq.s32.totalorder %s9, 3
    %p62 = scmp.ne.s32.totalorder %s57, %s59
    %p63 = scmp.eq.s32.totalorder %s9, 0
    %p64 = por %p62, %p63
    %p65 = scmp.ne.s32.totalorder %s57, %s59
    %p66 = scmp.eq.s32.totalorder %s14, 3
    %p67 = por %p65, %p66
    %p68 = scmp.ne.s32.totalorder %s59, %s60
    %p69 = scmp.eq.s32.totalorder %s14, 0
    %p70 = por %p68, %p69
    %p71 = scmp.ne.s32.totalorder %s59, %s60
    %p72 = scmp.eq.s32.totalorder %s15, 3
    %p73 = por %p71, %p72
    %p75 = scmp.ne.s32.totalorder %s60, %s74
    %p76 = scmp.eq.s32.totalorder %s15, 0
    %p77 = por %p75, %p76
    %s79 = sadd.s32 %s78, 1
    %p82 = scmp.eq.s32.totalorder %s9, 3
    %p83 = scmp.ne.s32.totalorder %s78, %s80
    %p84 = scmp.eq.s32.totalorder %s9, 0
    %p85 = por %p83, %p84
    %p86 = scmp.ne.s32.totalorder %s78, %s80
    %p87 = scmp.eq.s32.totalorder %s14, 3
    %p88 = por %p86, %p87
    %p89 = scmp.ne.s32.totalorder %s80, %s81
    %p90 = scmp.eq.s32.totalorder %s14, 0
    %p91 = por %p89, %p90
    %p92 = scmp.ne.s32.totalorder %s80, %s81
    %p93 = scmp.eq.s32.totalorder %s15, 3
    %p94 = por %p92, %p93
    %p96 = scmp.ne.s32.totalorder %s81, %s95
    %p97 = scmp.eq.s32.totalorder %s15, 0
    %p98 = por %p96, %p97
    %s99 = ssub.s32 %s16, %s28
    %s100 = ssub.s32 %s17, %s24
    %s101 = sor.u32 %s99, %s100
    %p102 = scmp.eq.s32.totalorder %s101, 0
    %s104 = sadd.s32 %s103, 1
    %s105 = scalar_select %p102, %s103, %s104
    %p108 = pneg %p102
    %p109 = scmp.eq.s32.totalorder %s9, 3
    %p110 = por %p108, %p109
    %p111 = scmp.ne.s32.totalorder %s103, %s106
    %p112 = scmp.eq.s32.totalorder %s9, 0
    %p113 = por %p111, %p112
    %p114 = scmp.ne.s32.totalorder %s103, %s106
    %p115 = scmp.eq.s32.totalorder %s14, 3
    %p116 = por %p114, %p115
    %p117 = scmp.ne.s32.totalorder %s106, %s107
    %p118 = scmp.eq.s32.totalorder %s14, 0
    %p119 = por %p117, %p118
    %p120 = scmp.ne.s32.totalorder %s106, %s107
    %p121 = scmp.eq.s32.totalorder %s15, 3
    %p122 = por %p120, %p121
    %p124 = scmp.ne.s32.totalorder %s107, %s123
    %p125 = scmp.eq.s32.totalorder %s15, 0
    %p126 = por %p124, %p125
    %p127 = scmp.le.s32.totalorder 1, %s9
    %p128 = scmp.lt.s32.totalorder %s9, 5
    %p129 = pnand %p127, %p128
    %p130 = pneg %p129
    // Predicated region
    $region9: #{midscope_conv2d_block.5} parent=5 // pred_check
      _
    $region10: #{midscope_conv2d_block.5} parent=5 // pred_check_branch
      %132 = sbr.rel (%p129) target = $region12
    $region11: #{midscope_conv2d_block.5} parent=5 // pred_region
      %s133 = ssub.s32 %s9, 1
      // Predicated region
      $region13: #{midscope_conv2d_block.5} parent=11 // pred_check
        %p134 = pneg %p70
      $region14: #{midscope_conv2d_block.5} parent=11 // pred_check_branch
        %136 = sbr.rel (%p134) target = $region16
      $region15: #{midscope_conv2d_block.5} parent=11 // pred_region
        _
      $region16: #{midscope_conv2d_block.5} parent=11 // pred_fallthru
        _
      // Predicated region
      $region17: #{midscope_conv2d_block.5} parent=11 // pred_check
        %p137 = pneg %p91
      $region18: #{midscope_conv2d_block.5} parent=11 // pred_check_branch
        %139 = sbr.rel (%p137) target = $region20
      $region19: #{midscope_conv2d_block.5} parent=11 // pred_region
        _
      $region20: #{midscope_conv2d_block.5} parent=11 // pred_fallthru
        _
    $region12: #{midscope_conv2d_block.5} parent=5 // pred_fallthru
      _
    %p140 = scmp.lt.s32.totalorder %s9, 4
    // Predicated region
    $region21: #{midscope_conv2d_block.5} parent=5 // pred_check
      %p141 = pneg %p140
    $region22: #{midscope_conv2d_block.5} parent=5 // pred_check_branch
      %143 = sbr.rel (%p141) target = $region24
    $region23: #{midscope_conv2d_block.5} parent=5 // pred_region
      // Predicated region
      $region25: #{midscope_conv2d_block.5} parent=23 // pred_check
        %p144 = pneg %p43
      $region26: #{midscope_conv2d_block.5} parent=23 // pred_check_branch
        %146 = sbr.rel (%p144) target = $region28
      $region27: #{midscope_conv2d_block.5} parent=23 // pred_region
        %p147 = scmp.lt.s32.totalorder %s16, 1
        %s148 = scalar_select %p147, %s16, 1
        %p149 = scmp.lt.s32.totalorder %s17, 1
        %s150 = scalar_select %p149, %s17, 1
        %s151 = smul.addr %s148, 2
        %s152 = sadd.s32 %s150, %s151
        %s153 = smul.addr %s152, 8
        %s154 = scalar_lea.vmem %s0, %s153
      $region28: #{midscope_conv2d_block.5} parent=23 // pred_fallthru
        _
    $region24: #{midscope_conv2d_block.5} parent=5 // pred_fallthru
      _
    %p155 = scmp.le.s32.totalorder 1, %s9
    %p156 = scmp.lt.s32.totalorder %s9, 5
    %p157 = pnand %p155, %p156
    %p158 = pneg %p157
    // Predicated region
    $region29: #{midscope_conv2d_block.5} parent=5 // pred_check
      _
    $region30: #{midscope_conv2d_block.5} parent=5 // pred_check_branch
      %160 = sbr.rel (%p157) target = $region32
    $region31: #{midscope_conv2d_block.5} parent=5 // pred_region
      %s161 = ssub.s32 %s9, 1
      %p162 = scmp.lt.s32.totalorder %s18, 1
      %s163 = scalar_select %p162, %s18, 1
      %p164 = scmp.lt.s32.totalorder %s19, 1
      %s165 = scalar_select %p164, %s19, 1
      %s166 = smul.addr %s163, 2
      %s167 = sadd.s32 %s165, %s166
      %s168 = smul.addr %s167, 8
      %s169 = scalar_lea.vmem %s0, %s168
      %p170 = pneg %p49
      %p171 = pneg %p46
      %p172 = pneg %p70
      %p173 = pneg %p67
      %p174 = pneg %p91
      %p175 = pneg %p88
      %p176 = pneg %p119
      %p177 = pneg %p116
      %p178 = scmp.lt.s32.totalorder %s18, 1
      %s179 = scalar_select %p178, %s18, 1
      %p180 = scmp.lt.s32.totalorder %s19, 1
      %s181 = scalar_select %p180, %s19, 1
      %s182 = smul.addr %s179, 2
      %s183 = sadd.s32 %s181, %s182
      %s184 = smul.addr %s183, 8
      %s185 = scalar_lea.vmem %s3, %s184
      %p186 = scmp.lt.s32.totalorder %s18, 1
      %s187 = scalar_select %p186, %s18, 1
      %p188 = scmp.lt.s32.totalorder %s19, 1
      %s189 = scalar_select %p188, %s19, 1
      %s190 = smul.addr %s187, 2
      %s191 = sadd.s32 %s189, %s190
      %s192 = smul.addr %s191, 8
      %s193 = scalar_lea.vmem %s0, %s192
      %p194 = scmp.lt.s32.totalorder %s18, 1
      %s195 = scalar_select %p194, %s18, 1
      %p196 = scmp.lt.s32.totalorder %s19, 1
      %s197 = scalar_select %p196, %s19, 1
      %s198 = smul.addr %s195, 2
      %s199 = sadd.s32 %s197, %s198
      %s200 = smul.addr %s199, 8
      %s201 = scalar_lea.vmem %s3, %s200
      %v202 = vld [vmem:[%s193] sm:$0xff]
      %v203 = vld [vmem:[%s1] sm:$0xff]
      %205 = vset.pattern.permute.xlu0 0
      %206 = vperm.xlu0 %205, %v203
      %v207 = vpop.permute.xlu0 %206
      %v209 = vmul.f32 %v202, %v207
      %v210 = vld [vmem:[%s2] sm:$0xff]
      %212 = vset.pattern.permute.xlu0 0
      %213 = vperm.xlu0 %212, %v210
      %v214 = vpop.permute.xlu0 %213
      %v216 = vadd.f32 %v209, %v214
      %v217 = vmax.f32 %v216, 0.0
      %218 = vst [vmem:[%s201] sm:$0xff] %v217
      %p219 = scmp.lt.s32.totalorder %s18, 1
      %s220 = scalar_select %p219, %s18, 1
      %p221 = scmp.lt.s32.totalorder %s19, 1
      %s222 = scalar_select %p221, %s19, 1
      %s223 = smul.addr %s220, 2
      %s224 = sadd.s32 %s222, %s223
      %s225 = smul.addr %s224, 8
      %s226 = scalar_lea.vmem %s3, %s225
      // Predicated region
      $region33: #{midscope_conv2d_block.5} parent=31 // pred_check
        %p227 = pneg %p116
      $region34: #{midscope_conv2d_block.5} parent=31 // pred_check_branch
        %229 = sbr.rel (%p227) target = $region36
      $region35: #{midscope_conv2d_block.5} parent=31 // pred_region
        _
      $region36: #{midscope_conv2d_block.5} parent=31 // pred_fallthru
        _
    $region32: #{midscope_conv2d_block.5} parent=5 // pred_fallthru
      _
    %p230 = scmp.le.s32.totalorder 2, %s9
    // Predicated region
    $region37: #{midscope_conv2d_block.5} parent=5 // pred_check
      %p231 = pneg %p230
    $region38: #{midscope_conv2d_block.5} parent=5 // pred_check_branch
      %233 = sbr.rel (%p231) target = $region40
    $region39: #{midscope_conv2d_block.5} parent=5 // pred_region
      %s234 = ssub.s32 %s9, 2
      // Predicated region
      $region41: #{midscope_conv2d_block.5} parent=39 // pred_check
        %p235 = pneg %p122
      $region42: #{midscope_conv2d_block.5} parent=39 // pred_check_branch
        %237 = sbr.rel (%p235) target = $region44
      $region43: #{midscope_conv2d_block.5} parent=39 // pred_region
        %p238 = scmp.lt.s32.totalorder %s20, 1
        %s239 = scalar_select %p238, %s20, 1
        %p240 = scmp.lt.s32.totalorder %s21, 1
        %s241 = scalar_select %p240, %s21, 1
        %s242 = smul.addr %s239, 2
        %s243 = sadd.s32 %s241, %s242
        %s244 = smul.addr %s243, 8
        %s245 = scalar_lea.vmem %s3, %s244
      $region44: #{midscope_conv2d_block.5} parent=39 // pred_fallthru
        _
    $region40: #{midscope_conv2d_block.5} parent=5 // pred_fallthru
      _
  $region6: #{midscope_conv2d_block.5} parent=0 // loop_footer
    %s13 = sadd.s32 1, %s9
  $region7: #{midscope_conv2d_block.5} parent=0 // loop_footer_branch
    %8 = sbr.rel target = $region3
  $region8: #{midscope_conv2d_block.5} parent=0 // loop_exit
    _

// kernel: midscope_conv2d_block.4
$region0: #{midscope_conv2d_block.4}
  #allocation0 [shape = 'u32[]', space=smem, size = 0x4, offset = 0x4, fixed_abs, tag = 'smem constant byte address 0x4 - core index']
  #allocation1 [shape = 'u32[144,128]{1,0:T(1,128)}', space=vmem, size = 0x12000, scoped, tag = 'internal scratch']
  %s0 = inlined_call_operand.vmem [shape: f32[2,8,256], index: 0, kind: input, shape index: {}, may-alias: {0,1,2}]
  %s1 = inlined_call_operand.vmem [shape: f32[2,8,256], index: 1, kind: input, shape index: {}, may-alias: {0,1,2}]
  %s2 = inlined_call_operand.vmem [shape: f32[2,8,256], index: 2, kind: input, shape index: {}, may-alias: {0,1,2}]
  %s3 = inlined_call_operand.vmem [shape: f32[8,72], index: 3, kind: input, shape index: {}]
  %s4 = inlined_call_operand.vmem [shape: f32[8,1], index: 4, kind: input, shape index: {}]
  %s5 = inlined_call_operand.vmem [shape: f32[8,1], index: 5, kind: input, shape index: {}]
  %s6 = inlined_call_operand.vmem [shape: f32[2,8,256], index: 6, kind: output, shape index: {0}]
  %s7 = inlined_call_operand.vmem [shape: f32[2,2,8,2], index: 7, kind: output, shape index: {1}]
  %8 = xla_tuple %s6, %s7
  %s9 = sld [smem:[#allocation0]]
  $region65: #{midscope_conv2d_block.4} parent=0
    _
  %s11 = ssub.s32 1, %s9
  %s12 = scalar_select 0, %s11, %s9
  loop: start=0, step=1, limit=6
  $region2: #{midscope_conv2d_block.4} parent=0 // loop_pre_header
    _
  $region3: #{midscope_conv2d_block.4} parent=0 // loop_header
    %s14 = sphi 0, %s18
    %p15 = scmp.ge.s32.totalorder %s14, 6
    %s21 = sphi 0, %s33
    %s22 = sphi 0, %s29
    %s23 = sphi 0, %s21
    %s24 = sphi 0, %s22
    %s25 = sphi 0, %s23
    %s26 = sphi 0, %s24
    %s38 = sphi 0, %s40
    %s41 = sphi 0, %s38
    %s42 = sphi 0, %s41
    %s58 = sphi 0, %s42
    %s72 = sphi 0, %s74
    %s75 = sphi 0, %s72
    %s76 = sphi 0, %s75
    %s92 = sphi 0, %s76
    %s106 = sphi 0, %s108
    %s109 = sphi 0, %s106
    %s110 = sphi 0, %s109
    %s126 = sphi 0, %s110
    %s130 = sphi 0, %s130
    %s132 = sphi 0, %s130
    %s133 = sphi 0, %s132
    %s147 = sphi 0, %s133
    %s151 = sphi 0, %s151
    %s153 = sphi 0, %s151
    %s154 = sphi 0, %s153
    %s168 = sphi 0, %s154
    %s172 = sphi 0, %s172
    %s174 = sphi 0, %s172
    %s175 = sphi 0, %s174
    %s189 = sphi 0, %s175
    %s197 = sphi 0, %s199
    %s200 = sphi 0, %s197
    %s201 = sphi 0, %s200
    %s217 = sphi 0, %s201
    %s225 = sphi 0, %s227
    %s228 = sphi 0, %s225
    %s229 = sphi 0, %s228
    %s245 = sphi 0, %s229
  $region4: #{midscope_conv2d_block.4} parent=0 // loop_header_branch
    %17 = sbr.rel (%p15) target = $region8
  $region5: #{midscope_conv2d_block.4} parent=0 // loop_body
    %s19 = ssub.s32 %s14, 1
    %s20 = ssub.s32 %s14, 2
    %s27 = sadd.s32 1, %s22
    %p28 = scmp.ge.s32.totalorder %s27, 2
    %s29 = scalar_select %p28, 0, %s27
    %s30 = sadd.s32 1, %s21
    %s31 = scalar_select %p28, %s30, %s21
    %p32 = scmp.ge.s32.totalorder %s31, 2
    %s33 = scalar_select %p32, 0, %s31
    %s34 = ssub.s32 %s21, %s33
    %s35 = ssub.s32 %s22, %s29
    %s36 = sor.u32 %s34, %s35
    %p37 = scmp.eq.s32.totalorder %s36, 0
    %s39 = sadd.s32 %s38, 1
    %s40 = scalar_select %p37, %s38, %s39
    %p43 = pneg %p37
    %p44 = scmp.eq.s32.totalorder %s14, 3
    %p45 = por %p43, %p44
    %p46 = scmp.ne.s32.totalorder %s38, %s41
    %p47 = scmp.eq.s32.totalorder %s14, 0
    %p48 = por %p46, %p47
    %p49 = scmp.ne.s32.totalorder %s38, %s41
    %p50 = scmp.eq.s32.totalorder %s19, 3
    %p51 = por %p49, %p50
    %p52 = scmp.ne.s32.totalorder %s41, %s42
    %p53 = scmp.eq.s32.totalorder %s19, 0
    %p54 = por %p52, %p53
    %p55 = scmp.ne.s32.totalorder %s41, %s42
    %p56 = scmp.eq.s32.totalorder %s20, 3
    %p57 = por %p55, %p56
    %p59 = scmp.ne.s32.totalorder %s42, %s58
    %p60 = scmp.eq.s32.totalorder %s20, 0
    %p61 = por %p59, %p60
    %s62 = ssub.s32 %s22, 1
    %p63 = scmp.gt.s32.totalorder %s62, 0
    %s64 = scalar_select %p63, %s62, 0
    %s65 = ssub.s32 %s29, 1
    %p66 = scmp.gt.s32.totalorder %s65, 0
    %s67 = scalar_select %p66, %s65, 0
    %s68 = ssub.s32 %s21, %s33
    %s69 = ssub.s32 %s64, %s67
    %s70 = sor.u32 %s68, %s69
    %p71 = scmp.eq.s32.totalorder %s70, 0
    %s73 = sadd.s32 %s72, 1
    %s74 = scalar_select %p71, %s72, %s73
    %p77 = pneg %p71
    %p78 = scmp.eq.s32.totalorder %s14, 3
    %p79 = por %p77, %p78
    %p80 = scmp.ne.s32.totalorder %s72, %s75
    %p81 = scmp.eq.s32.totalorder %s14, 0
    %p82 = por %p80, %p81
    %p83 = scmp.ne.s32.totalorder %s72, %s75
    %p84 = scmp.eq.s32.totalorder %s19, 3
    %p85 = por %p83, %p84
    %p86 = scmp.ne.s32.totalorder %s75, %s76
    %p87 = scmp.eq.s32.totalorder %s19, 0
    %p88 = por %p86, %p87
    %p89 = scmp.ne.s32.totalorder %s75, %s76
    %p90 = scmp.eq.s32.totalorder %s20, 3
    %p91 = por %p89, %p90
    %p93 = scmp.ne.s32.totalorder %s76, %s92
    %p94 = scmp.eq.s32.totalorder %s20, 0
    %p95 = por %p93, %p94
    %s96 = sadd.s32 %s22, 1
    %p97 = scmp.lt.s32.totalorder %s96, 1
    %s98 = scalar_select %p97, %s96, 1
    %s99 = sadd.s32 %s29, 1
    %p100 = scmp.lt.s32.totalorder %s99, 1
    %s101 = scalar_select %p100, %s99, 1
    %s102 = ssub.s32 %s21, %s33
    %s103 = ssub.s32 %s98, %s101
    %s104 = sor.u32 %s102, %s103
    %p105 = scmp.eq.s32.totalorder %s104, 0
    %s107 = sadd.s32 %s106, 1
    %s108 = scalar_select %p105, %s106, %s107
    %p111 = pneg %p105
    %p112 = scmp.eq.s32.totalorder %s14, 3
    %p113 = por %p111, %p112
    %p114 = scmp.ne.s32.totalorder %s106, %s109
    %p115 = scmp.eq.s32.totalorder %s14, 0
    %p116 = por %p114, %p115
    %p117 = scmp.ne.s32.totalorder %s106, %s109
    %p118 = scmp.eq.s32.totalorder %s19, 3
    %p119 = por %p117, %p118
    %p120 = scmp.ne.s32.totalorder %s109, %s110
    %p121 = scmp.eq.s32.totalorder %s19, 0
    %p122 = por %p120, %p121
    %p123 = scmp.ne.s32.totalorder %s109, %s110
    %p124 = scmp.eq.s32.totalorder %s20, 3
    %p125 = por %p123, %p124
    %p127 = scmp.ne.s32.totalorder %s110, %s126
    %p128 = scmp.eq.s32.totalorder %s20, 0
    %p129 = por %p127, %p128
    %s131 = sadd.s32 %s130, 1
    %p134 = scmp.eq.s32.totalorder %s14, 3
    %p135 = scmp.ne.s32.totalorder %s130, %s132
    %p136 = scmp.eq.s32.totalorder %s14, 0
    %p137 = por %p135, %p136
    %p138 = scmp.ne.s32.totalorder %s130, %s132
    %p139 = scmp.eq.s32.totalorder %s19, 3
    %p140 = por %p138, %p139
    %p141 = scmp.ne.s32.totalorder %s132, %s133
    %p142 = scmp.eq.s32.totalorder %s19, 0
    %p143 = por %p141, %p142
    %p144 = scmp.ne.s32.totalorder %s132, %s133
    %p145 = scmp.eq.s32.totalorder %s20, 3
    %p146 = por %p144, %p145
    %p148 = scmp.ne.s32.totalorder %s133, %s147
    %p149 = scmp.eq.s32.totalorder %s20, 0
    %p150 = por %p148, %p149
    %s152 = sadd.s32 %s151, 1
    %p155 = scmp.eq.s32.totalorder %s14, 3
    %p156 = scmp.ne.s32.totalorder %s151, %s153
    %p157 = scmp.eq.s32.totalorder %s14, 0
    %p158 = por %p156, %p157
    %p159 = scmp.ne.s32.totalorder %s151, %s153
    %p160 = scmp.eq.s32.totalorder %s19, 3
    %p161 = por %p159, %p160
    %p162 = scmp.ne.s32.totalorder %s153, %s154
    %p163 = scmp.eq.s32.totalorder %s19, 0
    %p164 = por %p162, %p163
    %p165 = scmp.ne.s32.totalorder %s153, %s154
    %p166 = scmp.eq.s32.totalorder %s20, 3
    %p167 = por %p165, %p166
    %p169 = scmp.ne.s32.totalorder %s154, %s168
    %p170 = scmp.eq.s32.totalorder %s20, 0
    %p171 = por %p169, %p170
    %s173 = sadd.s32 %s172, 1
    %p176 = scmp.eq.s32.totalorder %s14, 3
    %p177 = scmp.ne.s32.totalorder %s172, %s174
    %p178 = scmp.eq.s32.totalorder %s14, 0
    %p179 = por %p177, %p178
    %p180 = scmp.ne.s32.totalorder %s172, %s174
    %p181 = scmp.eq.s32.totalorder %s19, 3
    %p182 = por %p180, %p181
    %p183 = scmp.ne.s32.totalorder %s174, %s175
    %p184 = scmp.eq.s32.totalorder %s19, 0
    %p185 = por %p183, %p184
    %p186 = scmp.ne.s32.totalorder %s174, %s175
    %p187 = scmp.eq.s32.totalorder %s20, 3
    %p188 = por %p186, %p187
    %p190 = scmp.ne.s32.totalorder %s175, %s189
    %p191 = scmp.eq.s32.totalorder %s20, 0
    %p192 = por %p190, %p191
    %s193 = ssub.s32 %s21, %s33
    %s194 = ssub.s32 %s22, %s29
    %s195 = sor.u32 %s193, %s194
    %p196 = scmp.eq.s32.totalorder %s195, 0
    %s198 = sadd.s32 %s197, 1
    %s199 = scalar_select %p196, %s197, %s198
    %p202 = pneg %p196
    %p203 = scmp.eq.s32.totalorder %s14, 3
    %p204 = por %p202, %p203
    %p205 = scmp.ne.s32.totalorder %s197, %s200
    %p206 = scmp.eq.s32.totalorder %s14, 0
    %p207 = por %p205, %p206
    %p208 = scmp.ne.s32.totalorder %s197, %s200
    %p209 = scmp.eq.s32.totalorder %s19, 3
    %p210 = por %p208, %p209
    %p211 = scmp.ne.s32.totalorder %s200, %s201
    %p212 = scmp.eq.s32.totalorder %s19, 0
    %p213 = por %p211, %p212
    %p214 = scmp.ne.s32.totalorder %s200, %s201
    %p215 = scmp.eq.s32.totalorder %s20, 3
    %p216 = por %p214, %p215
    %p218 = scmp.ne.s32.totalorder %s201, %s217
    %p219 = scmp.eq.s32.totalorder %s20, 0
    %p220 = por %p218, %p219
    %s221 = ssub.s32 %s21, %s33
    %s222 = ssub.s32 %s22, %s29
    %s223 = sor.u32 %s221, %s222
    %p224 = scmp.eq.s32.totalorder %s223, 0
    %s226 = sadd.s32 %s225, 1
    %s227 = scalar_select %p224, %s225, %s226
    %p230 = pneg %p224
    %p231 = scmp.eq.s32.totalorder %s14, 3
    %p232 = por %p230, %p231
    %p233 = scmp.ne.s32.totalorder %s225, %s228
    %p234 = scmp.eq.s32.totalorder %s14, 0
    %p235 = por %p233, %p234
    %p236 = scmp.ne.s32.totalorder %s225, %s228
    %p237 = scmp.eq.s32.totalorder %s19, 3
    %p238 = por %p236, %p237
    %p239 = scmp.ne.s32.totalorder %s228, %s229
    %p240 = scmp.eq.s32.totalorder %s19, 0
    %p241 = por %p239, %p240
    %p242 = scmp.ne.s32.totalorder %s228, %s229
    %p243 = scmp.eq.s32.totalorder %s20, 3
    %p244 = por %p242, %p243
    %p246 = scmp.ne.s32.totalorder %s229, %s245
    %p247 = scmp.eq.s32.totalorder %s20, 0
    %p248 = por %p246, %p247
    %p249 = scmp.le.s32.totalorder 1, %s14
    %p250 = scmp.lt.s32.totalorder %s14, 5
    %p251 = pnand %p249, %p250
    %p252 = pneg %p251
    // Predicated region
    $region9: #{midscope_conv2d_block.4} parent=5 // pred_check
      _
    $region10: #{midscope_conv2d_block.4} parent=5 // pred_check_branch
      %254 = sbr.rel (%p251) target = $region12
    $region11: #{midscope_conv2d_block.4} parent=5 // pred_region
      %s255 = ssub.s32 %s14, 1
      // Predicated region
      $region13: #{midscope_conv2d_block.4} parent=11 // pred_check
        %p256 = pneg %p143
      $region14: #{midscope_conv2d_block.4} parent=11 // pred_check_branch
        %258 = sbr.rel (%p256) target = $region16
      $region15: #{midscope_conv2d_block.4} parent=11 // pred_region
        _
      $region16: #{midscope_conv2d_block.4} parent=11 // pred_fallthru
        _
      // Predicated region
      $region17: #{midscope_conv2d_block.4} parent=11 // pred_check
        %p259 = pneg %p164
      $region18: #{midscope_conv2d_block.4} parent=11 // pred_check_branch
        %261 = sbr.rel (%p259) target = $region20
      $region19: #{midscope_conv2d_block.4} parent=11 // pred_region
        _
      $region20: #{midscope_conv2d_block.4} parent=11 // pred_fallthru
        _
      // Predicated region
      $region21: #{midscope_conv2d_block.4} parent=11 // pred_check
        %p262 = pneg %p185
      $region22: #{midscope_conv2d_block.4} parent=11 // pred_check_branch
        %264 = sbr.rel (%p262) target = $region24
      $region23: #{midscope_conv2d_block.4} parent=11 // pred_region
        _
      $region24: #{midscope_conv2d_block.4} parent=11 // pred_fallthru
        _
    $region12: #{midscope_conv2d_block.4} parent=5 // pred_fallthru
      _
    %p265 = scmp.lt.s32.totalorder %s14, 4
    // Predicated region
    $region25: #{midscope_conv2d_block.4} parent=5 // pred_check
      %p266 = pneg %p265
    $region26: #{midscope_conv2d_block.4} parent=5 // pred_check_branch
      %268 = sbr.rel (%p266) target = $region28
    $region27: #{midscope_conv2d_block.4} parent=5 // pred_region
      // Predicated region
      $region29: #{midscope_conv2d_block.4} parent=27 // pred_check
        %p269 = pneg %p48
      $region30: #{midscope_conv2d_block.4} parent=27 // pred_check_branch
        %271 = sbr.rel (%p269) target = $region32
      $region31: #{midscope_conv2d_block.4} parent=27 // pred_region
        %p272 = scmp.lt.s32.totalorder %s21, 1
        %s273 = scalar_select %p272, %s21, 1
        %p274 = scmp.lt.s32.totalorder %s22, 1
        %s275 = scalar_select %p274, %s22, 1
        %s276 = smul.addr %s273, 2
        %s277 = sadd.s32 %s275, %s276
        %s278 = smul.addr %s277, 8
        %s279 = scalar_lea.vmem %s0, %s278
      $region32: #{midscope_conv2d_block.4} parent=27 // pred_fallthru
        _
      // Predicated region
      $region33: #{midscope_conv2d_block.4} parent=27 // pred_check
        %p280 = pneg %p82
      $region34: #{midscope_conv2d_block.4} parent=27 // pred_check_branch
        %282 = sbr.rel (%p280) target = $region36
      $region35: #{midscope_conv2d_block.4} parent=27 // pred_region
        %s283 = ssub.s32 %s22, 1
        %p284 = scmp.gt.s32.totalorder %s283, 0
        %s285 = scalar_select %p284, %s283, 0
        %p286 = scmp.lt.s32.totalorder %s21, 1
        %s287 = scalar_select %p286, %s21, 1
        %p288 = scmp.lt.s32.totalorder %s285, 1
        %s289 = scalar_select %p288, %s285, 1
        %s290 = smul.addr %s287, 2
        %s291 = sadd.s32 %s289, %s290
        %s292 = smul.addr %s291, 8
        %s293 = scalar_lea.vmem %s1, %s292
        %s294 = ssub.s32 %s22, 1
        %p295 = scmp.gt.s32.totalorder %s294, 0
        %s296 = scalar_select %p295, %s294, 0
      $region36: #{midscope_conv2d_block.4} parent=27 // pred_fallthru
        _
      // Predicated region
      $region37: #{midscope_conv2d_block.4} parent=27 // pred_check
        %p297 = pneg %p116
      $region38: #{midscope_conv2d_block.4} parent=27 // pred_check_branch
        %299 = sbr.rel (%p297) target = $region40
      $region39: #{midscope_conv2d_block.4} parent=27 // pred_region
        %s300 = sadd.s32 %s22, 1
        %p301 = scmp.lt.s32.totalorder %s300, 1
        %s302 = scalar_select %p301, %s300, 1
        %p303 = scmp.lt.s32.totalorder %s21, 1
        %s304 = scalar_select %p303, %s21, 1
        %p305 = scmp.lt.s32.totalorder %s302, 1
        %s306 = scalar_select %p305, %s302, 1
        %s307 = smul.addr %s304, 2
        %s308 = sadd.s32 %s306, %s307
        %s309 = smul.addr %s308, 8
        %s310 = scalar_lea.vmem %s2, %s309
        %s311 = sadd.s32 %s22, 1
        %p312 = scmp.lt.s32.totalorder %s311, 1
        %s313 = scalar_select %p312, %s311, 1
      $region40: #{midscope_conv2d_block.4} parent=27 // pred_fallthru
        _
    $region28: #{midscope_conv2d_block.4} parent=5 // pred_fallthru
      _
    %p314 = scmp.le.s32.totalorder 1, %s14
    %p315 = scmp.lt.s32.totalorder %s14, 5
    %p316 = pnand %p314, %p315
    %p317 = pneg %p316
    // Predicated region
    $region41: #{midscope_conv2d_block.4} parent=5 // pred_check
      _
    $region42: #{midscope_conv2d_block.4} parent=5 // pred_check_branch
      %319 = sbr.rel (%p316) target = $region44
    $region43: #{midscope_conv2d_block.4} parent=5 // pred_region
      %s320 = ssub.s32 %s14, 1
      %p321 = scmp.lt.s32.totalorder %s23, 1
      %s322 = scalar_select %p321, %s23, 1
      %p323 = scmp.lt.s32.totalorder %s24, 1
      %s324 = scalar_select %p323, %s24, 1
      %s325 = smul.addr %s322, 2
      %s326 = sadd.s32 %s324, %s325
      %s327 = smul.addr %s326, 8
      %s328 = scalar_lea.vmem %s0, %s327
      %p329 = pneg %p54
      %p330 = pneg %p51
      %s331 = ssub.s32 %s24, 1
      %p332 = scmp.gt.s32.totalorder %s331, 0
      %s333 = scalar_select %p332, %s331, 0
      %p334 = scmp.lt.s32.totalorder %s23, 1
      %s335 = scalar_select %p334, %s23, 1
      %p336 = scmp.lt.s32.totalorder %s333, 1
      %s337 = scalar_select %p336, %s333, 1
      %s338 = smul.addr %s335, 2
      %s339 = sadd.s32 %s337, %s338
      %s340 = smul.addr %s339, 8
      %s341 = scalar_lea.vmem %s1, %s340
      %p342 = pneg %p88
      %p343 = pneg %p85
      %s344 = sadd.s32 %s24, 1
      %p345 = scmp.lt.s32.totalorder %s344, 1
      %s346 = scalar_select %p345, %s344, 1
      %p347 = scmp.lt.s32.totalorder %s23, 1
      %s348 = scalar_select %p347, %s23, 1
      %p349 = scmp.lt.s32.totalorder %s346, 1
      %s350 = scalar_select %p349, %s346, 1
      %s351 = smul.addr %s348, 2
      %s352 = sadd.s32 %s350, %s351
      %s353 = smul.addr %s352, 8
      %s354 = scalar_lea.vmem %s2, %s353
      %p355 = pneg %p122
      %p356 = pneg %p119
      %p357 = pneg %p143
      %p358 = pneg %p140
      %p359 = pneg %p164
      %p360 = pneg %p161
      %p361 = pneg %p185
      %p362 = pneg %p182
      %p363 = pneg %p213
      %p364 = pneg %p210
      %p365 = scmp.lt.s32.totalorder %s23, 1
      %s366 = scalar_select %p365, %s23, 1
      %p367 = scmp.lt.s32.totalorder %s24, 1
      %s368 = scalar_select %p367, %s24, 1
      %s369 = smul.addr %s366, 2
      %s370 = sadd.s32 %s368, %s369
      %s371 = smul.addr %s370, 8
      %s372 = scalar_lea.vmem %s6, %s371
      %p373 = pneg %p241
      %p374 = pneg %p238
      %p375 = scmp.lt.s32.totalorder %s23, 1
      %s376 = scalar_select %p375, %s23, 1
      %p377 = scmp.lt.s32.totalorder %s24, 1
      %s378 = scalar_select %p377, %s24, 1
      %s379 = smul.addr %s376, 2
      %s380 = sadd.s32 %s378, %s379
      %s381 = smul.addr %s380, 8
      %s382 = scalar_lea.vmem %s7, %s381
      %p383 = scmp.lt.s32.totalorder %s23, 1
      %s384 = scalar_select %p383, %s23, 1
      %p385 = scmp.lt.s32.totalorder %s24, 1
      %s386 = scalar_select %p385, %s24, 1
      %s387 = smul.addr %s384, 2
      %s388 = sadd.s32 %s386, %s387
      %s389 = smul.addr %s388, 8
      %s390 = scalar_lea.vmem %s0, %s389
      %s391 = ssub.s32 %s24, 1
      %p392 = scmp.gt.s32.totalorder %s391, 0
      %s393 = scalar_select %p392, %s391, 0
      %p394 = scmp.lt.s32.totalorder %s23, 1
      %s395 = scalar_select %p394, %s23, 1
      %p396 = scmp.lt.s32.totalorder %s393, 1
      %s397 = scalar_select %p396, %s393, 1
      %s398 = smul.addr %s395, 2
      %s399 = sadd.s32 %s397, %s398
      %s400 = smul.addr %s399, 8
      %s401 = scalar_lea.vmem %s1, %s400
      %s402 = ssub.s32 %s24, 1
      %p403 = scmp.gt.s32.totalorder %s402, 0
      %s404 = scalar_select %p403, %s402, 0
      %s405 = sadd.s32 %s24, 1
      %p406 = scmp.lt.s32.totalorder %s405, 1
      %s407 = scalar_select %p406, %s405, 1
      %p408 = scmp.lt.s32.totalorder %s23, 1
      %s409 = scalar_select %p408, %s23, 1
      %p410 = scmp.lt.s32.totalorder %s407, 1
      %s411 = scalar_select %p410, %s407, 1
      %s412 = smul.addr %s409, 2
      %s413 = sadd.s32 %s411, %s412
      %s414 = smul.addr %s413, 8
      %s415 = scalar_lea.vmem %s2, %s414
      %s416 = sadd.s32 %s24, 1
      %p417 = scmp.lt.s32.totalorder %s416, 1
      %s418 = scalar_select %p417, %s416, 1
      %p419 = scmp.lt.s32.totalorder %s23, 1
      %s420 = scalar_select %p419, %s23, 1
      %p421 = scmp.lt.s32.totalorder %s24, 1
      %s422 = scalar_select %p421, %s24, 1
      %s423 = smul.addr %s420, 2
      %s424 = sadd.s32 %s422, %s423
      %s425 = smul.addr %s424, 8
      %s426 = scalar_lea.vmem %s6, %s425
      %p427 = scmp.lt.s32.totalorder %s23, 1
      %s428 = scalar_select %p427, %s23, 1
      %p429 = scmp.lt.s32.totalorder %s24, 1
      %s430 = scalar_select %p429, %s24, 1
      %s431 = smul.addr %s428, 2
      %s432 = sadd.s32 %s430, %s431
      %s433 = smul.addr %s432, 8
      %s434 = scalar_lea.vmem %s7, %s433
      %v435 = vld [vmem:[%s390] sm:$0xff]
      %v436 = vld [vmem:[%s401] sm:$0xff]
      %v437 = vld [vmem:[%s415] sm:$0xff]
      %v438 = vld [vmem:[%s4] sm:$0xff]
      %v439 = vld [vmem:[%s5] sm:$0xff]
      %441 = vset.pattern.permute.xlu0 0
      %442 = vperm.xlu0 %441, %v438
      %v443 = vpop.permute.xlu0 %442
      %v445 = vmul.f32 %v435, %v443
      %447 = vset.pattern.permute.xlu0 0
      %448 = vperm.xlu0 %447, %v439
      %v449 = vpop.permute.xlu0 %448
      %v451 = vadd.f32 %v445, %v449
      %v452 = vmax.f32 %v451, 0.0
      %v453 = vmul.f32 %v436, %v443
      %v454 = vadd.f32 %v453, %v449
      %v455 = vmax.f32 %v454, 0.0
      %v456 = vmul.f32 %v437, %v443
      %v457 = vadd.f32 %v456, %v449
      %v458 = vmax.f32 %v457, 0.0
      %p459 = scmp.gt.s32.totalorder %s24, 0
      %s460 = scalar_select %p459, 1, 0
      %v461 = vstv %s460
      %vm462 = vcmp.eq.s32.totalorder %v461, 1
      %v463 = vsel %vm462, %v455, 0.0
      %s464 = sadd.s32 %s24, 1
      %p465 = scmp.lt.s32.totalorder %s464, 2
      %s466 = scalar_select %p465, 1, 0
      %v467 = vstv %s466
      %vm468 = vcmp.eq.s32.totalorder %v467, 1
      %v469 = vsel %vm468, %v458, 0.0
      %471 = vrot.lane.b32.xlu0 %v463, 34
      %v472 = vpop.permute.xlu0 %471
      %475 = vrot.lane.b32.xlu0 %v452, 34
      %v476 = vpop.permute.xlu0 %475
      %479 = vrot.lane.b32.xlu0 %v469, 34
      %v480 = vpop.permute.xlu0 %479
      %vm482 = vcmask 15360
      %v483 = vsel %vm482, 0.0, %v472
      %vm484 = vcmask 277504
      %v485 = vsel %vm484, %v483, %v476
      %v486 = vsel %vm484, %v476, %v480
      %vm487 = vcmask 539648
      %v488 = vsel %vm487, %v486, 0.0
      %v489 = vlaneseq
      %v490 = vand.u32 %v489, 127
      %vm491 = vcmp.lt.s32.totalorder %v490, 0
      %v492 = vsub.s32 0, %v490
      %v493 = vsel %vm491, %v492, %v490
      %v494 = vshrl.u32 %v493, 4
      %v495 = vand.u32 %v493, 15
      %v496 = vsub.s32 0, %v495
      %v497 = vsel %vm491, %v496, %v495
      %vm498 = vcmp.ne.s32.totalorder %v497, 0
      %vm499 = vcmp.lt.s32.totalorder %v497, 0
      %vm500 = vmand %vm499, %vm498
      %v501 = vadd.s32 %v497, 16
      %v502 = vsel %vm500, %v501, %v497
      %vm503 = vcmp.ge.s32.totalorder %v502, 2
      %v504 = vsel %vm503, 1, 0
      %vm505 = vcmp.eq.s32.totalorder %v504, 1
      %v506 = vsel %vm505, %v485, 0.0
      %vm507 = vcmp.lt.s32.totalorder %v502, 14
      %v508 = vsel %vm507, 1, 0
      %vm509 = vcmp.eq.s32.totalorder %v508, 1
      %512 = vrot.lane.b32.xlu0 %v485, 124
      %v513 = vpop.permute.xlu0 %512
      %514 = vrot.lane.b32.xlu0 %v488, 124
      %v515 = vpop.permute.xlu0 %514
      %vm516 = vcmask 1014784
      %v517 = vsel %vm516, %v513, %v515
      %v519 = vsel %vm509, %v517, 0.0
      %520 = vrot.lane.b32.xlu0 %v485, 96
      %v521 = vpop.permute.xlu0 %520
      %522 = vrot.lane.b32.xlu0 %v488, 96
      %v523 = vpop.permute.xlu0 %522
      %vm524 = vcmask 785408
      %v525 = vsel %vm524, %v521, %v523
      %v527 = vsel %vm505, %v525, 0.0
      %528 = vrot.lane.b32.xlu0 %v485, 92
      %v529 = vpop.permute.xlu0 %528
      %530 = vrot.lane.b32.xlu0 %v488, 92
      %v531 = vpop.permute.xlu0 %530
      %vm532 = vcmask 752640
      %v533 = vsel %vm532, %v529, %v531
      %v535 = vsel %vm509, %v533, 0.0
      %536 = vrot.lane.b32.xlu0 %v485, 64
      %v537 = vpop.permute.xlu0 %536
      %538 = vrot.lane.b32.xlu0 %v488, 64
      %v539 = vpop.permute.xlu0 %538
      %vm540 = vcmask 523264
      %v541 = vsel %vm540, %v537, %v539
      %v543 = vsel %vm505, %v541, 0.0
      %544 = vrot.lane.b32.xlu0 %v485, 60
      %v545 = vpop.permute.xlu0 %544
      %546 = vrot.lane.b32.xlu0 %v488, 60
      %v547 = vpop.permute.xlu0 %546
      %vm548 = vcmask 490496
      %v549 = vsel %vm548, %v545, %v547
      %v551 = vsel %vm509, %v549, 0.0
      %552 = vrot.lane.b32.xlu0 %v485, 126
      %v553 = vpop.permute.xlu0 %552
      %554 = vrot.lane.b32.xlu0 %v488, 126
      %v555 = vpop.permute.xlu0 %554
      %vm556 = vcmask 1031168
      %v557 = vsel %vm556, %v553, %v555
      %559 = vrot.lane.b32.xlu0 %v485, 94
      %v560 = vpop.permute.xlu0 %559
      %561 = vrot.lane.b32.xlu0 %v488, 94
      %v562 = vpop.permute.xlu0 %561
      %vm563 = vcmask 769024
      %v564 = vsel %vm563, %v560, %v562
      %566 = vrot.lane.b32.xlu0 %v485, 62
      %v567 = vpop.permute.xlu0 %566
      %568 = vrot.lane.b32.xlu0 %v488, 62
      %v569 = vpop.permute.xlu0 %568
      %vm570 = vcmask 506880
      %v571 = vsel %vm570, %v567, %v569
      %v573 = vld [vmem:[%s3] sm:$0xff]
      %vm574 = vcmask 588800
      %v576 = vsel %vm574, %v573, 0
      %578 = vmatprep.subr.mxu0 0.0
      %579 = vmatpush1.msra.mxu0 0.0
      %580 = vmatprep.subr.mxu0 0.0
      %581 = vmatpush1.msra.mxu0 0.0
      %582 = vmatprep.subr.mxu0 0.0
      %583 = vmatpush1.msra.mxu0 0.0
      %584 = vmatprep.subr.mxu0 0.0
      %585 = vmatpush1.msra.mxu0 0.0
      %586 = vmatprep.subr.mxu0 0.0
      %587 = vmatpush1.msra.mxu0 0.0
      %588 = vmatprep.subr.mxu0 0.0
      %589 = vmatpush1.msra.mxu0 0.0
      %590 = vmatprep.subr.mxu0 0.0
      %591 = vmatpush1.msra.mxu0 0.0
      %592 = vmatprep.subr.mxu0 0.0
      %593 = vmatpush1.msra.mxu0 %v551
      %594 = vmatprep.subr.mxu0 0.0
      %595 = vmatpush1.msra.mxu0 %v571
      %596 = vmatprep.subr.mxu0 0.0
      %597 = vmatpush1.msra.mxu0 %v543
      %598 = vmatprep.subr.mxu0 0.0
      %599 = vmatpush1.msra.mxu0 %v535
      %600 = vmatprep.subr.mxu0 0.0
      %601 = vmatpush1.msra.mxu0 %v564
      %602 = vmatprep.subr.mxu0 0.0
      %603 = vmatpush1.msra.mxu0 %v527
      %604 = vmatprep.subr.mxu0 0.0
      %605 = vmatpush1.msra.mxu0 %v519
      %606 = vmatprep.subr.mxu0 0.0
      %607 = vmatpush1.msra.mxu0 %v557
      %608 = vmatprep.subr.mxu0 0.0
      %609 = vmatpush1.msra.mxu0 %v506
      %610 = vmatprep.subr.mxu0 0.0
      %611 = vmatpush2.msra.mxu0 0.0
      %612 = vmatprep.subr.mxu0 0.0
      %613 = vmatpush2.msra.mxu0 0.0
      %614 = vmatprep.subr.mxu0 0.0
      %615 = vmatpush2.msra.mxu0 0.0
      %616 = vmatprep.subr.mxu0 0.0
      %617 = vmatpush2.msra.mxu0 0.0
      %618 = vmatprep.subr.mxu0 0.0
      %619 = vmatpush2.msra.mxu0 0.0
      %620 = vmatprep.subr.mxu0 0.0
      %621 = vmatpush2.msra.mxu0 0.0
      %622 = vmatprep.subr.mxu0 0.0
      %623 = vmatpush2.msra.mxu0 0.0
      %624 = vmatprep.subr.mxu0 0.0
      %625 = vmatpush2.msra.mxu0 0.0
      %626 = vmatprep.subr.mxu0 0.0
      %627 = vmatpush2.msra.mxu0 0.0
      %628 = vmatprep.subr.mxu0 0.0
      %629 = vmatpush2.msra.mxu0 0.0
      %630 = vmatprep.subr.mxu0 0.0
      %631 = vmatpush2.msra.mxu0 0.0
      %632 = vmatprep.subr.mxu0 0.0
      %633 = vmatpush2.msra.mxu0 0.0
      %634 = vmatprep.subr.mxu0 0.0
      %635 = vmatpush2.msra.mxu0 0.0
      %636 = vmatprep.subr.mxu0 0.0
      %637 = vmatpush2.msra.mxu0 0.0
      %638 = vmatprep.subr.mxu0 0.0
      %639 = vmatpush2.msra.mxu0 0.0
      %640 = vmatprep.subr.mxu0 0.0
      %641 = vmatpush2.msra.mxu0 0.0
      %642 = vmatprep.mubr.f32.mxu0 0.0
      %643 = vmatmul.mubr.f32.gmra.mxu0 %v576
      %v644 = vpop.f32.mrf.mxu0
      %v645 = vadd.f32 0.0, %v644
      %v646 = vpop.f32.mrf.mxu0
      %647 = vdwg.mxu0
      %648 = vst [vmem:[%s426] sm:$0xff] %v645
      %649 = vadd.xlane.f32.xlu0 %v645
      %v650 = vpop.xlane.xlu0 %649
      %v651 = vmul.f32 %v645, %v645
      %652 = vadd.xlane.f32.xlu0 %v651
      %v653 = vpop.xlane.xlu0 %652
      %vm654 = vcmask 7168
      %v655 = vsel %vm654, %v650, %v653
      %656 = vst.msk [vmem:[%s434] sm:$0xff] %vm482, %v655
      %p657 = scmp.lt.s32.totalorder %s23, 1
      %s658 = scalar_select %p657, %s23, 1
      %p659 = scmp.lt.s32.totalorder %s24, 1
      %s660 = scalar_select %p659, %s24, 1
      %s661 = smul.addr %s658, 2
      %s662 = sadd.s32 %s660, %s661
      %s663 = smul.addr %s662, 8
      %s664 = scalar_lea.vmem %s6, %s663
      %p665 = scmp.lt.s32.totalorder %s23, 1
      %s666 = scalar_select %p665, %s23, 1
      %p667 = scmp.lt.s32.totalorder %s24, 1
      %s668 = scalar_select %p667, %s24, 1
      %s669 = smul.addr %s666, 2
      %s670 = sadd.s32 %s668, %s669
      %s671 = smul.addr %s670, 8
      %s672 = scalar_lea.vmem %s7, %s671
      // Predicated region
      $region45: #{midscope_conv2d_block.4} parent=43 // pred_check
        %p673 = pneg %p210
      $region46: #{midscope_conv2d_block.4} parent=43 // pred_check_branch
        %675 = sbr.rel (%p673) target = $region48
      $region47: #{midscope_conv2d_block.4} parent=43 // pred_region
        _
      $region48: #{midscope_conv2d_block.4} parent=43 // pred_fallthru
        _
      // Predicated region
      $region49: #{midscope_conv2d_block.4} parent=43 // pred_check
        %p676 = pneg %p238
      $region50: #{midscope_conv2d_block.4} parent=43 // pred_check_branch
        %678 = sbr.rel (%p676) target = $region52
      $region51: #{midscope_conv2d_block.4} parent=43 // pred_region
        _
      $region52: #{midscope_conv2d_block.4} parent=43 // pred_fallthru
        _
    $region44: #{midscope_conv2d_block.4} parent=5 // pred_fallthru
      _
    %p679 = scmp.le.s32.totalorder 2, %s14
    // Predicated region
    $region53: #{midscope_conv2d_block.4} parent=5 // pred_check
      %p680 = pneg %p679
    $region54: #{midscope_conv2d_block.4} parent=5 // pred_check_branch
      %682 = sbr.rel (%p680) target = $region56
    $region55: #{midscope_conv2d_block.4} parent=5 // pred_region
      %s683 = ssub.s32 %s14, 2
      // Predicated region
      $region57: #{midscope_conv2d_block.4} parent=55 // pred_check
        %p684 = pneg %p216
      $region58: #{midscope_conv2d_block.4} parent=55 // pred_check_branch
        %686 = sbr.rel (%p684) target = $region60
      $region59: #{midscope_conv2d_block.4} parent=55 // pred_region
        %p687 = scmp.lt.s32.totalorder %s25, 1
        %s688 = scalar_select %p687, %s25, 1
        %p689 = scmp.lt.s32.totalorder %s26, 1
        %s690 = scalar_select %p689, %s26, 1
        %s691 = smul.addr %s688, 2
        %s692 = sadd.s32 %s690, %s691
        %s693 = smul.addr %s692, 8
        %s694 = scalar_lea.vmem %s6, %s693
      $region60: #{midscope_conv2d_block.4} parent=55 // pred_fallthru
        _
      // Predicated region
      $region61: #{midscope_conv2d_block.4} parent=55 // pred_check
        %p695 = pneg %p244
      $region62: #{midscope_conv2d_block.4} parent=55 // pred_check_branch
        %697 = sbr.rel (%p695) target = $region64
      $region63: #{midscope_conv2d_block.4} parent=55 // pred_region
        %p698 = scmp.lt.s32.totalorder %s25, 1
        %s699 = scalar_select %p698, %s25, 1
        %p700 = scmp.lt.s32.totalorder %s26, 1
        %s701 = scalar_select %p700, %s26, 1
        %s702 = smul.addr %s699, 2
        %s703 = sadd.s32 %s701, %s702
        %s704 = smul.addr %s703, 8
        %s705 = scalar_lea.vmem %s7, %s704
      $region64: #{midscope_conv2d_block.4} parent=55 // pred_fallthru
        _
    $region56: #{midscope_conv2d_block.4} parent=5 // pred_fallthru
      _
  $region6: #{midscope_conv2d_block.4} parent=0 // loop_footer
    %s18 = sadd.s32 1, %s14
  $region7: #{midscope_conv2d_block.4} parent=0 // loop_footer_branch
    %13 = sbr.rel target = $region3
  $region8: #{midscope_conv2d_block.4} parent=0 // loop_exit
    _

</llo_original>
